<compile_context>
chip_gen: v5e
topology: v5e:2x2
jax: 0.10.0
libtpu: 0.0.40
codegen_flags: <defaults>
</compile_context>

<pallas_src>
import functools

import jax
import jax.numpy as jnp
from jax import lax
from jax.experimental import pallas as pl

LEAKY_ALPHA = 0.2
NEG_INF = -9e15


def _leaky_relu(x):
    return jnp.where(x > 0, x, LEAKY_ALPHA * x)


def _elu(x):
    return jnp.where(x > 0, x, jnp.exp(x) - 1.0)


def _masked_softmax(e, mask, col_valid):
    # mask: cov > 0 (torch zero_vec path); col_valid keeps only the N real node
    # columns so a fully-masked row degenerates to uniform over N (torch parity).
    e = jnp.where(mask, e, NEG_INF)
    m = jnp.max(e, axis=-1, keepdims=True)
    p = jnp.where(col_valid, jnp.exp(e - m), 0.0)
    return p * pl.reciprocal(jnp.sum(p, axis=-1, keepdims=True), approx=True)


def _col_dot(mat, row):
    # mat: [R, H], row: [1, H] -> [R, 1]
    return lax.dot_general(mat, row, (((1,), (1,)), ((), ())),
                           preferred_element_type=jnp.float32)


def _row_dot(row, mat):
    # row: [1, H], mat: [R, H] -> [1, R]
    return lax.dot_general(row, mat, (((1,), (1,)), ((), ())),
                           preferred_element_type=jnp.float32)


def _decision_kernel(B, S, T, F_, heads, H, NP,
                     nodes_ref, prew_ref,
                     W1_ref, avec_ref, W2_ref,
                     Wm1_ref, Wm2_ref, Wm3_ref, wmisc_ref,
                     Ws1_ref, Ws2_ref, Ws3_ref, bs12_ref, bs3_ref,
                     w_ref, score_ref):
    N, D = S + 1, T * F_
    f32, bf16 = jnp.float32, jnp.bfloat16

    nodes = nodes_ref[...]                                   # [B*NP, D] f32
    nodes_bf = nodes.astype(bf16)

    # ---- GAT layer-1 projection + hoisted source logits (all batches, per head) ----
    wh = []      # per-head [B*NP, H] f32
    fsrc = []    # per-head [B*NP, 1] f32
    for h in range(heads):
        p = jnp.dot(nodes_bf, W1_ref[h], preferred_element_type=f32)
        wh.append(p)
        fsrc.append(_col_dot(p, avec_ref[h:h + 1, :]))

    col_valid = lax.broadcasted_iota(jnp.int32, (1, NP), 1) < N   # [1, NP]
    inv_dm1 = 1.0 / float(D - 1)

    # ---- merged per-batch region: covariance mask + both attention layers (in vregs) ----
    hid_parts = []
    for b in range(B):
        lo = b * NP
        nb = nodes[lo:lo + NP, :]                                           # [NP, D]
        xc = nb - jnp.mean(nb, axis=-1, keepdims=True)
        cov = lax.dot_general(xc, xc, (((1,), (1,)), ((), ())),
                              preferred_element_type=f32) * inv_dm1         # [NP, NP]
        mask = cov > 0.0

        # layer-1 multi-head attention; W2 folded in as per-head partial sums
        h2_b = jnp.zeros((NP, H), f32)
        for h in range(heads):
            Wh_bh = wh[h][lo:lo + NP, :]                                    # [NP, H]
            fs = fsrc[h][lo:lo + NP, :]                                     # [NP, 1]
            fd = _row_dot(avec_ref[heads + h:heads + h + 1, :], Wh_bh)      # [1, NP]
            att = _masked_softmax(_leaky_relu(fs + fd), mask, col_valid)
            ho_bh = _elu(jnp.dot(att, Wh_bh, preferred_element_type=f32))   # [NP, H]
            h2_b = h2_b + jnp.dot(ho_bh.astype(bf16),
                                  W2_ref[h * H:(h + 1) * H, :],
                                  preferred_element_type=f32)

        # GAT output-layer attention
        fs2 = _col_dot(h2_b, avec_ref[2 * heads:2 * heads + 1, :])          # [NP, 1]
        fd2 = _row_dot(avec_ref[2 * heads + 1:2 * heads + 2, :], h2_b)      # [1, NP]
        att2 = _masked_softmax(_leaky_relu(fs2 + fd2), mask, col_valid)
        hid_parts.append(_elu(jnp.dot(att2, h2_b, preferred_element_type=f32)))

    hidden = jnp.concatenate(hid_parts, axis=0)                             # [B*NP, H]

    # ---- w_mlp on concat([hidden, pre_w]) — fused over all B*NP node rows ----
    z = (jnp.dot(hidden.astype(bf16), Wm1_ref[...], preferred_element_type=f32)
         + prew_ref[...] * wmisc_ref[0:1, :] + wmisc_ref[1:2, :])
    z = jnp.maximum(z, 0.0)
    z = jnp.maximum(jnp.dot(z.astype(bf16), Wm2_ref[...], preferred_element_type=f32)
                    + wmisc_ref[2:3, :], 0.0)
    o = _row_dot(Wm3_ref[...], z) + wmisc_ref[3:4, 0:1]                     # [1, B*NP]

    # per-batch softmax over the N real portfolio slots (exact reciprocal)
    lane = lax.broadcasted_iota(jnp.int32, (1, B * NP), 1)
    w_acc = jnp.zeros((1, B * NP), f32)
    for b in range(B):
        seg = (lane >= b * NP) & (lane < b * NP + N)
        ob = jnp.where(seg, o, NEG_INF)
        m = jnp.max(ob, axis=-1, keepdims=True)
        p = jnp.where(seg, jnp.exp(ob - m), 0.0)
        w_acc = w_acc + p / jnp.sum(p, axis=-1, keepdims=True)
    w_ref[...] = w_acc                                                      # [1, B*NP]

    # ---- score_mlp on the same node rows (cash/pad rows discarded by the wrapper) ----
    # Block-diagonal kron(I_T, W) weights keep the per-trading-point MLP lane-dense.
    s1 = jnp.maximum(jnp.dot(nodes_bf, Ws1_ref[...], preferred_element_type=f32)
                     + bs12_ref[0:1, :], 0.0)
    s2 = jnp.maximum(jnp.dot(s1.astype(bf16), Ws2_ref[...], preferred_element_type=f32)
                     + bs12_ref[1:2, :], 0.0)
    slog = jnp.dot(s2.astype(bf16), Ws3_ref[...], preferred_element_type=f32) + bs3_ref[...]
    score_ref[...] = 1.0 / (1.0 + jnp.exp(-slog))                           # [B*NP, T]


def init_params(key, feature_num, trading_points_num, hidden_size, head_num):
    """Deterministic synthetic parameters (mlp_layer_num = 2 is baked in)."""
    F_, H, heads = feature_num, hidden_size, head_num
    D = trading_points_num * feature_num

    def dense(k, shape, fan_in):
        return jax.random.normal(k, shape, jnp.float32) / jnp.sqrt(float(fan_in))

    ks = jax.random.split(key, 12)
    return {
        # GAT layer 1 (per head): W [D,H], attention vector a split into (src, dst)
        "W1":  dense(ks[0], (heads, D, H), D),
        "ah":  dense(ks[1], (heads, 2, H), H),
        # GAT output layer on concatenated heads
        "W2":  dense(ks[2], (heads * H, H), heads * H),
        "aout": dense(ks[3], (2, H), H),
        # w_mlp : (H+1) -> H -> H -> 1
        "Wm1": dense(ks[4], (H + 1, H), H + 1),
        "bm1": jnp.zeros((1, H), jnp.float32),
        "Wm2": dense(ks[5], (H, H), H),
        "bm2": jnp.zeros((1, H), jnp.float32),
        "Wm3": dense(ks[6], (H, 1), H),
        "bm3": jnp.zeros((1, 1), jnp.float32),
        # score_mlp : F -> H -> H -> 1
        "Ws1": dense(ks[7], (F_, H), F_),
        "bs1": jnp.zeros((1, H), jnp.float32),
        "Ws2": dense(ks[8], (H, H), H),
        "bs2": jnp.zeros((1, H), jnp.float32),
        "Ws3": dense(ks[9], (H, 1), H),
        "bs3": jnp.zeros((1, 1), jnp.float32),
    }


def pack_params(params, trading_points_num):
    """Pack the small weights into kernel-friendly slabs (bf16 for matmul weights)."""
    T = trading_points_num
    heads, D, H = params["W1"].shape
    bf16 = jnp.bfloat16

    # attention vectors: rows [0:heads]=a_src, [heads:2h]=a_dst, [2h]=aout_src, [2h+1]=aout_dst
    avec = jnp.concatenate([params["ah"][:, 0, :], params["ah"][:, 1, :],
                            params["aout"]], axis=0)                          # [2*heads+2, H]
    # w_mlp misc rows: [Wm1 pre_w-row, bm1, bm2, bm3(padded)]
    wmisc = jnp.concatenate([params["Wm1"][H:H + 1, :], params["bm1"], params["bm2"],
                             jnp.pad(params["bm3"], ((0, 0), (0, H - 1)))], axis=0)
    eye_t = jnp.eye(T, dtype=jnp.float32)
    return {
        "W1": params["W1"].astype(bf16),                                     # [heads, D, H]
        "avec": avec,                                                        # f32
        "W2": params["W2"].astype(bf16),                                     # [heads*H, H]
        "Wm1": params["Wm1"][0:H, :].astype(bf16),                           # [H, H]
        "Wm2": params["Wm2"].astype(bf16),                                   # [H, H]
        "Wm3": params["Wm3"].T,                                              # [1, H] f32
        "wmisc": wmisc,                                                      # [4, H] f32
        # block-diagonal score_mlp weights: kron(I_T, W)
        "Ws1b": jnp.kron(eye_t, params["Ws1"]).astype(bf16),                 # [T*F, T*H]
        "Ws2b": jnp.kron(eye_t, params["Ws2"]).astype(bf16),                 # [T*H, T*H]
        "Ws3b": jnp.kron(eye_t, params["Ws3"]).astype(bf16),                 # [T*H, T]
        "bs12": jnp.concatenate([jnp.tile(params["bs1"], (1, T)),
                                 jnp.tile(params["bs2"], (1, T))], axis=0),  # [2, T*H] f32
        "bs3b": jnp.tile(params["bs3"], (1, T)),                             # [1, T] f32
    }


def decision_making_forward(micro_price, pre_w, packed, *, k, heads, hidden):
    B, S, T, F_ = micro_price.shape
    N = S + 1
    NP = 8 * pl.cdiv(N, 8)                    # per-batch node count padded to sublane tile
    D = T * F_

    # --- glue: build the 8-aligned node slab host-side (cash row, stock rows, zero pads) ---
    cash = jnp.ones((B, 1, D), jnp.float32)
    stocks = micro_price.reshape(B, S, D)
    pad = jnp.zeros((B, NP - N, D), jnp.float32)
    nodes = jnp.concatenate([cash, stocks, pad], axis=1).reshape(B * NP, D)
    prew_col = jnp.pad(pre_w, ((0, 0), (0, NP - N))).reshape(B * NP, 1)

    kernel = functools.partial(_decision_kernel, B, S, T, F_, heads, hidden, NP)

    w2d, score2d = pl.pallas_call(
        kernel,
        out_shape=(jax.ShapeDtypeStruct((1, B * NP), jnp.float32),   # w, lane-dense
                   jax.ShapeDtypeStruct((B * NP, T), jnp.float32)),  # score per node row
    )(nodes, prew_col,
      packed["W1"], packed["avec"], packed["W2"],
      packed["Wm1"], packed["Wm2"], packed["Wm3"], packed["wmisc"],
      packed["Ws1b"], packed["Ws2b"], packed["Ws3b"], packed["bs12"], packed["bs3b"])

    w = w2d.reshape(B, NP)[:, :N]                     # [B, 1+S]
    score = score2d.reshape(B, NP, T)[:, 1:N, :]      # [B, S, T] (drop cash + pad rows)

    # --- glue: top-k trading-point index selection (no clean Pallas equivalent) ---
    # TODO(synk): top-k index selection stays in plain JAX.
    _, sell_points = lax.top_k(score, k)              # largest-k indices
    _, buy_points = lax.top_k(-score, k)              # smallest-k indices
    buy_or_sell = (w[:, 1:] > pre_w[:, 1:])[..., None]          # [B, S, 1]
    trading_points = jnp.where(buy_or_sell, buy_points, sell_points)
    return w, trading_points, score


if __name__ == "__main__":
    key = jax.random.PRNGKey(0)
    B, S, T, F_ = 2, 4, 8, 4          # batch, stock_num, trading_points_num, feature_num
    H, heads, k = 32, 2, 3            # hidden_size, head_num, top-k
    N = S + 1

    kmp, kpw, kparam = jax.random.split(key, 3)
    micro_price = jax.random.normal(kmp, (B, S, T, F_), jnp.float32)
    pre_w_raw = jax.random.uniform(kpw, (B, N), jnp.float32) + 0.1
    pre_w = pre_w_raw / jnp.sum(pre_w_raw, axis=-1, keepdims=True)

    params = init_params(kparam, F_, T, H, heads)
    packed = pack_params(params, T)

    w, trading_points, score = decision_making_forward(
        micro_price, pre_w, packed, k=k, heads=heads, hidden=H)
    jax.block_until_ready((w, trading_points, score))

    assert w.shape == (B, N)
    assert trading_points.shape == (B, S, k)
    assert score.shape == (B, S, T)
    assert bool(jnp.all(jnp.isfinite(w))) and bool(jnp.all(jnp.isfinite(score)))
    assert bool(jnp.all(jnp.abs(jnp.sum(w, axis=-1) - 1.0) < 1e-3))
    print("KERNEL_OK")
</pallas_src>

<mosaic_0001>
module attributes {stable_mosaic.version = 11 : i64} {
  func.func @_decision_kernel(%arg0: memref<16x32xf32, #tpu.memory_space<vmem>>, %arg1: memref<16x1xf32, #tpu.memory_space<vmem>>, %arg2: memref<2x32x32xbf16, #tpu.memory_space<vmem>>, %arg3: memref<6x32xf32, #tpu.memory_space<vmem>>, %arg4: memref<64x32xbf16, #tpu.memory_space<vmem>>, %arg5: memref<32x32xbf16, #tpu.memory_space<vmem>>, %arg6: memref<32x32xbf16, #tpu.memory_space<vmem>>, %arg7: memref<1x32xf32, #tpu.memory_space<vmem>>, %arg8: memref<4x32xf32, #tpu.memory_space<vmem>>, %arg9: memref<32x256xbf16, #tpu.memory_space<vmem>>, %arg10: memref<256x256xbf16, #tpu.memory_space<vmem>>, %arg11: memref<256x8xbf16, #tpu.memory_space<vmem>>, %arg12: memref<2x256xf32, #tpu.memory_space<vmem>>, %arg13: memref<1x8xf32, #tpu.memory_space<vmem>>, %arg14: memref<1x16xf32, #tpu.memory_space<vmem>>, %arg15: memref<16x8xf32, #tpu.memory_space<vmem>>) attributes {dimension_semantics = [], scalar_prefetch = 0 : i64, scratch_operands = 0 : i64, tpu.core_type = #tpu.core_type<tc>} {
    %c0 = arith.constant 0 : index
    %c0_0 = arith.constant 0 : index
    %0 = vector.load %arg0[%c0, %c0_0] : memref<16x32xf32, #tpu.memory_space<vmem>>, vector<16x32xf32>
    %1 = arith.truncf %0 : vector<16x32xf32> to vector<16x32xbf16>
    %c0_1 = arith.constant 0 : index
    %c0_2 = arith.constant 0 : index
    %c0_3 = arith.constant 0 : index
    %2 = vector.load %arg2[%c0_1, %c0_2, %c0_3] : memref<2x32x32xbf16, #tpu.memory_space<vmem>>, vector<1x32x32xbf16>
    %3 = vector.shape_cast %2 : vector<1x32x32xbf16> to vector<32x32xbf16>
    %cst = arith.constant dense<0.000000e+00> : vector<16x32xf32>
    %4 = tpu.matmul %1, %3, %cst {dimension_numbers = #tpu.dot_dimension_numbers<[1], [0], [0], [1], [0, 0, 1, 1], [], []>} : vector<16x32xbf16>, vector<32x32xbf16>, vector<16x32xf32> -> vector<16x32xf32>
    %c0_4 = arith.constant 0 : index
    %c0_5 = arith.constant 0 : index
    %5 = vector.load %arg3[%c0_4, %c0_5] : memref<6x32xf32, #tpu.memory_space<vmem>>, vector<1x32xf32>
    %cst_6 = arith.constant dense<0.000000e+00> : vector<16x1xf32>
    %6 = tpu.matmul %4, %5, %cst_6 {dimension_numbers = #tpu.dot_dimension_numbers<[1], [1], [0], [0], [0, 0, 1, 0], [], []>} : vector<16x32xf32>, vector<1x32xf32>, vector<16x1xf32> -> vector<16x1xf32>
    %c1 = arith.constant 1 : index
    %c0_7 = arith.constant 0 : index
    %c0_8 = arith.constant 0 : index
    %7 = vector.load %arg2[%c1, %c0_7, %c0_8] : memref<2x32x32xbf16, #tpu.memory_space<vmem>>, vector<1x32x32xbf16>
    %8 = vector.shape_cast %7 : vector<1x32x32xbf16> to vector<32x32xbf16>
    %cst_9 = arith.constant dense<0.000000e+00> : vector<16x32xf32>
    %9 = tpu.matmul %1, %8, %cst_9 {dimension_numbers = #tpu.dot_dimension_numbers<[1], [0], [0], [1], [0, 0, 1, 1], [], []>} : vector<16x32xbf16>, vector<32x32xbf16>, vector<16x32xf32> -> vector<16x32xf32>
    %c1_10 = arith.constant 1 : index
    %c0_11 = arith.constant 0 : index
    %10 = vector.load %arg3[%c1_10, %c0_11] : memref<6x32xf32, #tpu.memory_space<vmem>>, vector<1x32xf32>
    %cst_12 = arith.constant dense<0.000000e+00> : vector<16x1xf32>
    %11 = tpu.matmul %9, %10, %cst_12 {dimension_numbers = #tpu.dot_dimension_numbers<[1], [1], [0], [0], [0, 0, 1, 0], [], []>} : vector<16x32xf32>, vector<1x32xf32>, vector<16x1xf32> -> vector<16x1xf32>
    %12 = tpu.iota {dimensions = array<i32: 1>} : vector<1x8xi32>
    %c5_i32 = arith.constant 5 : i32
    %13 = vector.broadcast %c5_i32 : i32 to vector<1x8xi32>
    %14 = arith.cmpi slt, %12, %13 : vector<1x8xi32>
    %15 = vector.extract_strided_slice %0 {offsets = [0, 0], sizes = [8, 32], strides = [1, 1]} : vector<16x32xf32> to vector<8x32xf32>
    %cst_13 = arith.constant dense<0.000000e+00> : vector<8xf32>
    %16 = vector.multi_reduction <add>, %15, %cst_13 [1] : vector<8x32xf32> to vector<8xf32>
    %17 = vector.shape_cast %16 : vector<8xf32> to vector<8x1xf32>
    %cst_14 = arith.constant 3.200000e+01 : f32
    %18 = vector.broadcast %cst_14 : f32 to vector<8x1xf32>
    %19 = arith.divf %17, %18 : vector<8x1xf32>
    %20 = vector.broadcast %19 : vector<8x1xf32> to vector<8x32xf32>
    %21 = arith.subf %15, %20 : vector<8x32xf32>
    %cst_15 = arith.constant dense<0.000000e+00> : vector<8x8xf32>
    %22 = tpu.matmul %21, %21, %cst_15 {dimension_numbers = #tpu.dot_dimension_numbers<[1], [1], [0], [0], [0, 0, 1, 0], [], []>} : vector<8x32xf32>, vector<8x32xf32>, vector<8x8xf32> -> vector<8x8xf32>
    %cst_16 = arith.constant 0.0322580636 : f32
    %23 = vector.broadcast %cst_16 : f32 to vector<8x8xf32>
    %24 = arith.mulf %22, %23 : vector<8x8xf32>
    %cst_17 = arith.constant 0.000000e+00 : f32
    %25 = vector.broadcast %cst_17 : f32 to vector<8x8xf32>
    %26 = arith.cmpf ogt, %24, %25 : vector<8x8xf32>
    %cst_18 = arith.constant 0.000000e+00 : f32
    %27 = vector.broadcast %cst_18 : f32 to vector<8x32xf32>
    %28 = vector.extract_strided_slice %4 {offsets = [0, 0], sizes = [8, 32], strides = [1, 1]} : vector<16x32xf32> to vector<8x32xf32>
    %29 = vector.extract_strided_slice %6 {offsets = [0, 0], sizes = [8, 1], strides = [1, 1]} : vector<16x1xf32> to vector<8x1xf32>
    %c2 = arith.constant 2 : index
    %c0_19 = arith.constant 0 : index
    %30 = vector.load %arg3[%c2, %c0_19] : memref<6x32xf32, #tpu.memory_space<vmem>>, vector<1x32xf32>
    %cst_20 = arith.constant dense<0.000000e+00> : vector<1x8xf32>
    %31 = tpu.matmul %30, %28, %cst_20 {dimension_numbers = #tpu.dot_dimension_numbers<[1], [1], [0], [0], [0, 0, 1, 0], [], []>} : vector<1x32xf32>, vector<8x32xf32>, vector<1x8xf32> -> vector<1x8xf32>
    %32 = vector.broadcast %29 : vector<8x1xf32> to vector<8x8xf32>
    %33 = vector.broadcast %31 : vector<1x8xf32> to vector<8x8xf32>
    %34 = arith.addf %32, %33 : vector<8x8xf32>
    %cst_21 = arith.constant 0.000000e+00 : f32
    %35 = vector.broadcast %cst_21 : f32 to vector<8x8xf32>
    %36 = arith.cmpf ogt, %34, %35 : vector<8x8xf32>
    %cst_22 = arith.constant 2.000000e-01 : f32
    %37 = vector.broadcast %cst_22 : f32 to vector<8x8xf32>
    %38 = arith.mulf %37, %34 : vector<8x8xf32>
    %39 = arith.select %36, %34, %38 : vector<8x8xi1>, vector<8x8xf32>
    %cst_23 = arith.constant -9.000000e+15 : f32
    %40 = vector.broadcast %cst_23 : f32 to vector<8x8xf32>
    %41 = arith.select %26, %39, %40 : vector<8x8xi1>, vector<8x8xf32>
    %cst_24 = arith.constant dense<0xFF800000> : vector<8xf32>
    %42 = vector.multi_reduction <maximumf>, %41, %cst_24 [1] : vector<8x8xf32> to vector<8xf32>
    %43 = vector.shape_cast %42 : vector<8xf32> to vector<8x1xf32>
    %44 = vector.broadcast %43 : vector<8x1xf32> to vector<8x8xf32>
    %45 = arith.subf %41, %44 : vector<8x8xf32>
    %46 = math.exp %45 : vector<8x8xf32>
    %cst_25 = arith.constant 0.000000e+00 : f32
    %47 = vector.shape_cast %14 : vector<1x8xi1> to vector<1x8xi1>
    %48 = vector.broadcast %47 : vector<1x8xi1> to vector<8x8xi1>
    %49 = vector.broadcast %cst_25 : f32 to vector<8x8xf32>
    %50 = arith.select %48, %46, %49 : vector<8x8xi1>, vector<8x8xf32>
    %cst_26 = arith.constant dense<0.000000e+00> : vector<8xf32>
    %51 = vector.multi_reduction <add>, %50, %cst_26 [1] : vector<8x8xf32> to vector<8xf32>
    %52 = vector.shape_cast %51 : vector<8xf32> to vector<8x1xf32>
    %53 = tpu.reciprocal %52 {approx = true} : vector<8x1xf32> -> vector<8x1xf32>
    %54 = vector.broadcast %53 : vector<8x1xf32> to vector<8x8xf32>
    %55 = arith.mulf %50, %54 : vector<8x8xf32>
    %cst_27 = arith.constant dense<0.000000e+00> : vector<8x32xf32>
    %56 = tpu.matmul %55, %28, %cst_27 {dimension_numbers = #tpu.dot_dimension_numbers<[1], [0], [0], [1], [0, 0, 1, 1], [], []>} : vector<8x8xf32>, vector<8x32xf32>, vector<8x32xf32> -> vector<8x32xf32>
    %cst_28 = arith.constant 0.000000e+00 : f32
    %57 = vector.broadcast %cst_28 : f32 to vector<8x32xf32>
    %58 = arith.cmpf ogt, %56, %57 : vector<8x32xf32>
    %59 = math.exp %56 : vector<8x32xf32>
    %cst_29 = arith.constant 1.000000e+00 : f32
    %60 = vector.broadcast %cst_29 : f32 to vector<8x32xf32>
    %61 = arith.subf %59, %60 : vector<8x32xf32>
    %62 = arith.select %58, %56, %61 : vector<8x32xi1>, vector<8x32xf32>
    %63 = arith.truncf %62 : vector<8x32xf32> to vector<8x32xbf16>
    %c0_30 = arith.constant 0 : index
    %c0_31 = arith.constant 0 : index
    %64 = vector.load %arg4[%c0_30, %c0_31] : memref<64x32xbf16, #tpu.memory_space<vmem>>, vector<32x32xbf16>
    %cst_32 = arith.constant dense<0.000000e+00> : vector<8x32xf32>
    %65 = tpu.matmul %63, %64, %cst_32 {dimension_numbers = #tpu.dot_dimension_numbers<[1], [0], [0], [1], [0, 0, 1, 1], [], []>} : vector<8x32xbf16>, vector<32x32xbf16>, vector<8x32xf32> -> vector<8x32xf32>
    %66 = arith.addf %27, %65 : vector<8x32xf32>
    %67 = vector.extract_strided_slice %9 {offsets = [0, 0], sizes = [8, 32], strides = [1, 1]} : vector<16x32xf32> to vector<8x32xf32>
    %68 = vector.extract_strided_slice %11 {offsets = [0, 0], sizes = [8, 1], strides = [1, 1]} : vector<16x1xf32> to vector<8x1xf32>
    %c3 = arith.constant 3 : index
    %c0_33 = arith.constant 0 : index
    %69 = vector.load %arg3[%c3, %c0_33] : memref<6x32xf32, #tpu.memory_space<vmem>>, vector<1x32xf32>
    %cst_34 = arith.constant dense<0.000000e+00> : vector<1x8xf32>
    %70 = tpu.matmul %69, %67, %cst_34 {dimension_numbers = #tpu.dot_dimension_numbers<[1], [1], [0], [0], [0, 0, 1, 0], [], []>} : vector<1x32xf32>, vector<8x32xf32>, vector<1x8xf32> -> vector<1x8xf32>
    %71 = vector.broadcast %68 : vector<8x1xf32> to vector<8x8xf32>
    %72 = vector.broadcast %70 : vector<1x8xf32> to vector<8x8xf32>
    %73 = arith.addf %71, %72 : vector<8x8xf32>
    %cst_35 = arith.constant 0.000000e+00 : f32
    %74 = vector.broadcast %cst_35 : f32 to vector<8x8xf32>
    %75 = arith.cmpf ogt, %73, %74 : vector<8x8xf32>
    %cst_36 = arith.constant 2.000000e-01 : f32
    %76 = vector.broadcast %cst_36 : f32 to vector<8x8xf32>
    %77 = arith.mulf %76, %73 : vector<8x8xf32>
    %78 = arith.select %75, %73, %77 : vector<8x8xi1>, vector<8x8xf32>
    %cst_37 = arith.constant -9.000000e+15 : f32
    %79 = vector.broadcast %cst_37 : f32 to vector<8x8xf32>
    %80 = arith.select %26, %78, %79 : vector<8x8xi1>, vector<8x8xf32>
    %cst_38 = arith.constant dense<0xFF800000> : vector<8xf32>
    %81 = vector.multi_reduction <maximumf>, %80, %cst_38 [1] : vector<8x8xf32> to vector<8xf32>
    %82 = vector.shape_cast %81 : vector<8xf32> to vector<8x1xf32>
    %83 = vector.broadcast %82 : vector<8x1xf32> to vector<8x8xf32>
    %84 = arith.subf %80, %83 : vector<8x8xf32>
    %85 = math.exp %84 : vector<8x8xf32>
    %cst_39 = arith.constant 0.000000e+00 : f32
    %86 = vector.shape_cast %14 : vector<1x8xi1> to vector<1x8xi1>
    %87 = vector.broadcast %86 : vector<1x8xi1> to vector<8x8xi1>
    %88 = vector.broadcast %cst_39 : f32 to vector<8x8xf32>
    %89 = arith.select %87, %85, %88 : vector<8x8xi1>, vector<8x8xf32>
    %cst_40 = arith.constant dense<0.000000e+00> : vector<8xf32>
    %90 = vector.multi_reduction <add>, %89, %cst_40 [1] : vector<8x8xf32> to vector<8xf32>
    %91 = vector.shape_cast %90 : vector<8xf32> to vector<8x1xf32>
    %92 = tpu.reciprocal %91 {approx = true} : vector<8x1xf32> -> vector<8x1xf32>
    %93 = vector.broadcast %92 : vector<8x1xf32> to vector<8x8xf32>
    %94 = arith.mulf %89, %93 : vector<8x8xf32>
    %cst_41 = arith.constant dense<0.000000e+00> : vector<8x32xf32>
    %95 = tpu.matmul %94, %67, %cst_41 {dimension_numbers = #tpu.dot_dimension_numbers<[1], [0], [0], [1], [0, 0, 1, 1], [], []>} : vector<8x8xf32>, vector<8x32xf32>, vector<8x32xf32> -> vector<8x32xf32>
    %cst_42 = arith.constant 0.000000e+00 : f32
    %96 = vector.broadcast %cst_42 : f32 to vector<8x32xf32>
    %97 = arith.cmpf ogt, %95, %96 : vector<8x32xf32>
    %98 = math.exp %95 : vector<8x32xf32>
    %cst_43 = arith.constant 1.000000e+00 : f32
    %99 = vector.broadcast %cst_43 : f32 to vector<8x32xf32>
    %100 = arith.subf %98, %99 : vector<8x32xf32>
    %101 = arith.select %97, %95, %100 : vector<8x32xi1>, vector<8x32xf32>
    %102 = arith.truncf %101 : vector<8x32xf32> to vector<8x32xbf16>
    %c32 = arith.constant 32 : index
    %c0_44 = arith.constant 0 : index
    %103 = vector.load %arg4[%c32, %c0_44] : memref<64x32xbf16, #tpu.memory_space<vmem>>, vector<32x32xbf16>
    %cst_45 = arith.constant dense<0.000000e+00> : vector<8x32xf32>
    %104 = tpu.matmul %102, %103, %cst_45 {dimension_numbers = #tpu.dot_dimension_numbers<[1], [0], [0], [1], [0, 0, 1, 1], [], []>} : vector<8x32xbf16>, vector<32x32xbf16>, vector<8x32xf32> -> vector<8x32xf32>
    %105 = arith.addf %66, %104 : vector<8x32xf32>
    %c4 = arith.constant 4 : index
    %c0_46 = arith.constant 0 : index
    %106 = vector.load %arg3[%c4, %c0_46] : memref<6x32xf32, #tpu.memory_space<vmem>>, vector<1x32xf32>
    %cst_47 = arith.constant dense<0.000000e+00> : vector<8x1xf32>
    %107 = tpu.matmul %105, %106, %cst_47 {dimension_numbers = #tpu.dot_dimension_numbers<[1], [1], [0], [0], [0, 0, 1, 0], [], []>} : vector<8x32xf32>, vector<1x32xf32>, vector<8x1xf32> -> vector<8x1xf32>
    %c5 = arith.constant 5 : index
    %c0_48 = arith.constant 0 : index
    %108 = vector.load %arg3[%c5, %c0_48] : memref<6x32xf32, #tpu.memory_space<vmem>>, vector<1x32xf32>
    %cst_49 = arith.constant dense<0.000000e+00> : vector<1x8xf32>
    %109 = tpu.matmul %108, %105, %cst_49 {dimension_numbers = #tpu.dot_dimension_numbers<[1], [1], [0], [0], [0, 0, 1, 0], [], []>} : vector<1x32xf32>, vector<8x32xf32>, vector<1x8xf32> -> vector<1x8xf32>
    %110 = vector.broadcast %107 : vector<8x1xf32> to vector<8x8xf32>
    %111 = vector.broadcast %109 : vector<1x8xf32> to vector<8x8xf32>
    %112 = arith.addf %110, %111 : vector<8x8xf32>
    %cst_50 = arith.constant 0.000000e+00 : f32
    %113 = vector.broadcast %cst_50 : f32 to vector<8x8xf32>
    %114 = arith.cmpf ogt, %112, %113 : vector<8x8xf32>
    %cst_51 = arith.constant 2.000000e-01 : f32
    %115 = vector.broadcast %cst_51 : f32 to vector<8x8xf32>
    %116 = arith.mulf %115, %112 : vector<8x8xf32>
    %117 = arith.select %114, %112, %116 : vector<8x8xi1>, vector<8x8xf32>
    %cst_52 = arith.constant -9.000000e+15 : f32
    %118 = vector.broadcast %cst_52 : f32 to vector<8x8xf32>
    %119 = arith.select %26, %117, %118 : vector<8x8xi1>, vector<8x8xf32>
    %cst_53 = arith.constant dense<0xFF800000> : vector<8xf32>
    %120 = vector.multi_reduction <maximumf>, %119, %cst_53 [1] : vector<8x8xf32> to vector<8xf32>
    %121 = vector.shape_cast %120 : vector<8xf32> to vector<8x1xf32>
    %122 = vector.broadcast %121 : vector<8x1xf32> to vector<8x8xf32>
    %123 = arith.subf %119, %122 : vector<8x8xf32>
    %124 = math.exp %123 : vector<8x8xf32>
    %cst_54 = arith.constant 0.000000e+00 : f32
    %125 = vector.shape_cast %14 : vector<1x8xi1> to vector<1x8xi1>
    %126 = vector.broadcast %125 : vector<1x8xi1> to vector<8x8xi1>
    %127 = vector.broadcast %cst_54 : f32 to vector<8x8xf32>
    %128 = arith.select %126, %124, %127 : vector<8x8xi1>, vector<8x8xf32>
    %cst_55 = arith.constant dense<0.000000e+00> : vector<8xf32>
    %129 = vector.multi_reduction <add>, %128, %cst_55 [1] : vector<8x8xf32> to vector<8xf32>
    %130 = vector.shape_cast %129 : vector<8xf32> to vector<8x1xf32>
    %131 = tpu.reciprocal %130 {approx = true} : vector<8x1xf32> -> vector<8x1xf32>
    %132 = vector.broadcast %131 : vector<8x1xf32> to vector<8x8xf32>
    %133 = arith.mulf %128, %132 : vector<8x8xf32>
    %cst_56 = arith.constant dense<0.000000e+00> : vector<8x32xf32>
    %134 = tpu.matmul %133, %105, %cst_56 {dimension_numbers = #tpu.dot_dimension_numbers<[1], [0], [0], [1], [0, 0, 1, 1], [], []>} : vector<8x8xf32>, vector<8x32xf32>, vector<8x32xf32> -> vector<8x32xf32>
    %cst_57 = arith.constant 0.000000e+00 : f32
    %135 = vector.broadcast %cst_57 : f32 to vector<8x32xf32>
    %136 = arith.cmpf ogt, %134, %135 : vector<8x32xf32>
    %137 = math.exp %134 : vector<8x32xf32>
    %cst_58 = arith.constant 1.000000e+00 : f32
    %138 = vector.broadcast %cst_58 : f32 to vector<8x32xf32>
    %139 = arith.subf %137, %138 : vector<8x32xf32>
    %140 = arith.select %136, %134, %139 : vector<8x32xi1>, vector<8x32xf32>
    %141 = vector.extract_strided_slice %0 {offsets = [8, 0], sizes = [8, 32], strides = [1, 1]} : vector<16x32xf32> to vector<8x32xf32>
    %cst_59 = arith.constant dense<0.000000e+00> : vector<8xf32>
    %142 = vector.multi_reduction <add>, %141, %cst_59 [1] : vector<8x32xf32> to vector<8xf32>
    %143 = vector.shape_cast %142 : vector<8xf32> to vector<8x1xf32>
    %cst_60 = arith.constant 3.200000e+01 : f32
    %144 = vector.broadcast %cst_60 : f32 to vector<8x1xf32>
    %145 = arith.divf %143, %144 : vector<8x1xf32>
    %146 = vector.broadcast %145 : vector<8x1xf32> to vector<8x32xf32>
    %147 = arith.subf %141, %146 : vector<8x32xf32>
    %cst_61 = arith.constant dense<0.000000e+00> : vector<8x8xf32>
    %148 = tpu.matmul %147, %147, %cst_61 {dimension_numbers = #tpu.dot_dimension_numbers<[1], [1], [0], [0], [0, 0, 1, 0], [], []>} : vector<8x32xf32>, vector<8x32xf32>, vector<8x8xf32> -> vector<8x8xf32>
    %cst_62 = arith.constant 0.0322580636 : f32
    %149 = vector.broadcast %cst_62 : f32 to vector<8x8xf32>
    %150 = arith.mulf %148, %149 : vector<8x8xf32>
    %cst_63 = arith.constant 0.000000e+00 : f32
    %151 = vector.broadcast %cst_63 : f32 to vector<8x8xf32>
    %152 = arith.cmpf ogt, %150, %151 : vector<8x8xf32>
    %cst_64 = arith.constant 0.000000e+00 : f32
    %153 = vector.broadcast %cst_64 : f32 to vector<8x32xf32>
    %154 = vector.extract_strided_slice %4 {offsets = [8, 0], sizes = [8, 32], strides = [1, 1]} : vector<16x32xf32> to vector<8x32xf32>
    %155 = vector.extract_strided_slice %6 {offsets = [8, 0], sizes = [8, 1], strides = [1, 1]} : vector<16x1xf32> to vector<8x1xf32>
    %c2_65 = arith.constant 2 : index
    %c0_66 = arith.constant 0 : index
    %156 = vector.load %arg3[%c2_65, %c0_66] : memref<6x32xf32, #tpu.memory_space<vmem>>, vector<1x32xf32>
    %cst_67 = arith.constant dense<0.000000e+00> : vector<1x8xf32>
    %157 = tpu.matmul %156, %154, %cst_67 {dimension_numbers = #tpu.dot_dimension_numbers<[1], [1], [0], [0], [0, 0, 1, 0], [], []>} : vector<1x32xf32>, vector<8x32xf32>, vector<1x8xf32> -> vector<1x8xf32>
    %158 = vector.broadcast %155 : vector<8x1xf32> to vector<8x8xf32>
    %159 = vector.broadcast %157 : vector<1x8xf32> to vector<8x8xf32>
    %160 = arith.addf %158, %159 : vector<8x8xf32>
    %cst_68 = arith.constant 0.000000e+00 : f32
    %161 = vector.broadcast %cst_68 : f32 to vector<8x8xf32>
    %162 = arith.cmpf ogt, %160, %161 : vector<8x8xf32>
    %cst_69 = arith.constant 2.000000e-01 : f32
    %163 = vector.broadcast %cst_69 : f32 to vector<8x8xf32>
    %164 = arith.mulf %163, %160 : vector<8x8xf32>
    %165 = arith.select %162, %160, %164 : vector<8x8xi1>, vector<8x8xf32>
    %cst_70 = arith.constant -9.000000e+15 : f32
    %166 = vector.broadcast %cst_70 : f32 to vector<8x8xf32>
    %167 = arith.select %152, %165, %166 : vector<8x8xi1>, vector<8x8xf32>
    %cst_71 = arith.constant dense<0xFF800000> : vector<8xf32>
    %168 = vector.multi_reduction <maximumf>, %167, %cst_71 [1] : vector<8x8xf32> to vector<8xf32>
    %169 = vector.shape_cast %168 : vector<8xf32> to vector<8x1xf32>
    %170 = vector.broadcast %169 : vector<8x1xf32> to vector<8x8xf32>
    %171 = arith.subf %167, %170 : vector<8x8xf32>
    %172 = math.exp %171 : vector<8x8xf32>
    %cst_72 = arith.constant 0.000000e+00 : f32
    %173 = vector.shape_cast %14 : vector<1x8xi1> to vector<1x8xi1>
    %174 = vector.broadcast %173 : vector<1x8xi1> to vector<8x8xi1>
    %175 = vector.broadcast %cst_72 : f32 to vector<8x8xf32>
    %176 = arith.select %174, %172, %175 : vector<8x8xi1>, vector<8x8xf32>
    %cst_73 = arith.constant dense<0.000000e+00> : vector<8xf32>
    %177 = vector.multi_reduction <add>, %176, %cst_73 [1] : vector<8x8xf32> to vector<8xf32>
    %178 = vector.shape_cast %177 : vector<8xf32> to vector<8x1xf32>
    %179 = tpu.reciprocal %178 {approx = true} : vector<8x1xf32> -> vector<8x1xf32>
    %180 = vector.broadcast %179 : vector<8x1xf32> to vector<8x8xf32>
    %181 = arith.mulf %176, %180 : vector<8x8xf32>
    %cst_74 = arith.constant dense<0.000000e+00> : vector<8x32xf32>
    %182 = tpu.matmul %181, %154, %cst_74 {dimension_numbers = #tpu.dot_dimension_numbers<[1], [0], [0], [1], [0, 0, 1, 1], [], []>} : vector<8x8xf32>, vector<8x32xf32>, vector<8x32xf32> -> vector<8x32xf32>
    %cst_75 = arith.constant 0.000000e+00 : f32
    %183 = vector.broadcast %cst_75 : f32 to vector<8x32xf32>
    %184 = arith.cmpf ogt, %182, %183 : vector<8x32xf32>
    %185 = math.exp %182 : vector<8x32xf32>
    %cst_76 = arith.constant 1.000000e+00 : f32
    %186 = vector.broadcast %cst_76 : f32 to vector<8x32xf32>
    %187 = arith.subf %185, %186 : vector<8x32xf32>
    %188 = arith.select %184, %182, %187 : vector<8x32xi1>, vector<8x32xf32>
    %189 = arith.truncf %188 : vector<8x32xf32> to vector<8x32xbf16>
    %c0_77 = arith.constant 0 : index
    %c0_78 = arith.constant 0 : index
    %190 = vector.load %arg4[%c0_77, %c0_78] : memref<64x32xbf16, #tpu.memory_space<vmem>>, vector<32x32xbf16>
    %cst_79 = arith.constant dense<0.000000e+00> : vector<8x32xf32>
    %191 = tpu.matmul %189, %190, %cst_79 {dimension_numbers = #tpu.dot_dimension_numbers<[1], [0], [0], [1], [0, 0, 1, 1], [], []>} : vector<8x32xbf16>, vector<32x32xbf16>, vector<8x32xf32> -> vector<8x32xf32>
    %192 = arith.addf %153, %191 : vector<8x32xf32>
    %193 = vector.extract_strided_slice %9 {offsets = [8, 0], sizes = [8, 32], strides = [1, 1]} : vector<16x32xf32> to vector<8x32xf32>
    %194 = vector.extract_strided_slice %11 {offsets = [8, 0], sizes = [8, 1], strides = [1, 1]} : vector<16x1xf32> to vector<8x1xf32>
    %c3_80 = arith.constant 3 : index
    %c0_81 = arith.constant 0 : index
    %195 = vector.load %arg3[%c3_80, %c0_81] : memref<6x32xf32, #tpu.memory_space<vmem>>, vector<1x32xf32>
    %cst_82 = arith.constant dense<0.000000e+00> : vector<1x8xf32>
    %196 = tpu.matmul %195, %193, %cst_82 {dimension_numbers = #tpu.dot_dimension_numbers<[1], [1], [0], [0], [0, 0, 1, 0], [], []>} : vector<1x32xf32>, vector<8x32xf32>, vector<1x8xf32> -> vector<1x8xf32>
    %197 = vector.broadcast %194 : vector<8x1xf32> to vector<8x8xf32>
    %198 = vector.broadcast %196 : vector<1x8xf32> to vector<8x8xf32>
    %199 = arith.addf %197, %198 : vector<8x8xf32>
    %cst_83 = arith.constant 0.000000e+00 : f32
    %200 = vector.broadcast %cst_83 : f32 to vector<8x8xf32>
    %201 = arith.cmpf ogt, %199, %200 : vector<8x8xf32>
    %cst_84 = arith.constant 2.000000e-01 : f32
    %202 = vector.broadcast %cst_84 : f32 to vector<8x8xf32>
    %203 = arith.mulf %202, %199 : vector<8x8xf32>
    %204 = arith.select %201, %199, %203 : vector<8x8xi1>, vector<8x8xf32>
    %cst_85 = arith.constant -9.000000e+15 : f32
    %205 = vector.broadcast %cst_85 : f32 to vector<8x8xf32>
    %206 = arith.select %152, %204, %205 : vector<8x8xi1>, vector<8x8xf32>
    %cst_86 = arith.constant dense<0xFF800000> : vector<8xf32>
    %207 = vector.multi_reduction <maximumf>, %206, %cst_86 [1] : vector<8x8xf32> to vector<8xf32>
    %208 = vector.shape_cast %207 : vector<8xf32> to vector<8x1xf32>
    %209 = vector.broadcast %208 : vector<8x1xf32> to vector<8x8xf32>
    %210 = arith.subf %206, %209 : vector<8x8xf32>
    %211 = math.exp %210 : vector<8x8xf32>
    %cst_87 = arith.constant 0.000000e+00 : f32
    %212 = vector.shape_cast %14 : vector<1x8xi1> to vector<1x8xi1>
    %213 = vector.broadcast %212 : vector<1x8xi1> to vector<8x8xi1>
    %214 = vector.broadcast %cst_87 : f32 to vector<8x8xf32>
    %215 = arith.select %213, %211, %214 : vector<8x8xi1>, vector<8x8xf32>
    %cst_88 = arith.constant dense<0.000000e+00> : vector<8xf32>
    %216 = vector.multi_reduction <add>, %215, %cst_88 [1] : vector<8x8xf32> to vector<8xf32>
    %217 = vector.shape_cast %216 : vector<8xf32> to vector<8x1xf32>
    %218 = tpu.reciprocal %217 {approx = true} : vector<8x1xf32> -> vector<8x1xf32>
    %219 = vector.broadcast %218 : vector<8x1xf32> to vector<8x8xf32>
    %220 = arith.mulf %215, %219 : vector<8x8xf32>
    %cst_89 = arith.constant dense<0.000000e+00> : vector<8x32xf32>
    %221 = tpu.matmul %220, %193, %cst_89 {dimension_numbers = #tpu.dot_dimension_numbers<[1], [0], [0], [1], [0, 0, 1, 1], [], []>} : vector<8x8xf32>, vector<8x32xf32>, vector<8x32xf32> -> vector<8x32xf32>
    %cst_90 = arith.constant 0.000000e+00 : f32
    %222 = vector.broadcast %cst_90 : f32 to vector<8x32xf32>
    %223 = arith.cmpf ogt, %221, %222 : vector<8x32xf32>
    %224 = math.exp %221 : vector<8x32xf32>
    %cst_91 = arith.constant 1.000000e+00 : f32
    %225 = vector.broadcast %cst_91 : f32 to vector<8x32xf32>
    %226 = arith.subf %224, %225 : vector<8x32xf32>
    %227 = arith.select %223, %221, %226 : vector<8x32xi1>, vector<8x32xf32>
    %228 = arith.truncf %227 : vector<8x32xf32> to vector<8x32xbf16>
    %c32_92 = arith.constant 32 : index
    %c0_93 = arith.constant 0 : index
    %229 = vector.load %arg4[%c32_92, %c0_93] : memref<64x32xbf16, #tpu.memory_space<vmem>>, vector<32x32xbf16>
    %cst_94 = arith.constant dense<0.000000e+00> : vector<8x32xf32>
    %230 = tpu.matmul %228, %229, %cst_94 {dimension_numbers = #tpu.dot_dimension_numbers<[1], [0], [0], [1], [0, 0, 1, 1], [], []>} : vector<8x32xbf16>, vector<32x32xbf16>, vector<8x32xf32> -> vector<8x32xf32>
    %231 = arith.addf %192, %230 : vector<8x32xf32>
    %c4_95 = arith.constant 4 : index
    %c0_96 = arith.constant 0 : index
    %232 = vector.load %arg3[%c4_95, %c0_96] : memref<6x32xf32, #tpu.memory_space<vmem>>, vector<1x32xf32>
    %cst_97 = arith.constant dense<0.000000e+00> : vector<8x1xf32>
    %233 = tpu.matmul %231, %232, %cst_97 {dimension_numbers = #tpu.dot_dimension_numbers<[1], [1], [0], [0], [0, 0, 1, 0], [], []>} : vector<8x32xf32>, vector<1x32xf32>, vector<8x1xf32> -> vector<8x1xf32>
    %c5_98 = arith.constant 5 : index
    %c0_99 = arith.constant 0 : index
    %234 = vector.load %arg3[%c5_98, %c0_99] : memref<6x32xf32, #tpu.memory_space<vmem>>, vector<1x32xf32>
    %cst_100 = arith.constant dense<0.000000e+00> : vector<1x8xf32>
    %235 = tpu.matmul %234, %231, %cst_100 {dimension_numbers = #tpu.dot_dimension_numbers<[1], [1], [0], [0], [0, 0, 1, 0], [], []>} : vector<1x32xf32>, vector<8x32xf32>, vector<1x8xf32> -> vector<1x8xf32>
    %236 = vector.broadcast %233 : vector<8x1xf32> to vector<8x8xf32>
    %237 = vector.broadcast %235 : vector<1x8xf32> to vector<8x8xf32>
    %238 = arith.addf %236, %237 : vector<8x8xf32>
    %cst_101 = arith.constant 0.000000e+00 : f32
    %239 = vector.broadcast %cst_101 : f32 to vector<8x8xf32>
    %240 = arith.cmpf ogt, %238, %239 : vector<8x8xf32>
    %cst_102 = arith.constant 2.000000e-01 : f32
    %241 = vector.broadcast %cst_102 : f32 to vector<8x8xf32>
    %242 = arith.mulf %241, %238 : vector<8x8xf32>
    %243 = arith.select %240, %238, %242 : vector<8x8xi1>, vector<8x8xf32>
    %cst_103 = arith.constant -9.000000e+15 : f32
    %244 = vector.broadcast %cst_103 : f32 to vector<8x8xf32>
    %245 = arith.select %152, %243, %244 : vector<8x8xi1>, vector<8x8xf32>
    %cst_104 = arith.constant dense<0xFF800000> : vector<8xf32>
    %246 = vector.multi_reduction <maximumf>, %245, %cst_104 [1] : vector<8x8xf32> to vector<8xf32>
    %247 = vector.shape_cast %246 : vector<8xf32> to vector<8x1xf32>
    %248 = vector.broadcast %247 : vector<8x1xf32> to vector<8x8xf32>
    %249 = arith.subf %245, %248 : vector<8x8xf32>
    %250 = math.exp %249 : vector<8x8xf32>
    %cst_105 = arith.constant 0.000000e+00 : f32
    %251 = vector.shape_cast %14 : vector<1x8xi1> to vector<1x8xi1>
    %252 = vector.broadcast %251 : vector<1x8xi1> to vector<8x8xi1>
    %253 = vector.broadcast %cst_105 : f32 to vector<8x8xf32>
    %254 = arith.select %252, %250, %253 : vector<8x8xi1>, vector<8x8xf32>
    %cst_106 = arith.constant dense<0.000000e+00> : vector<8xf32>
    %255 = vector.multi_reduction <add>, %254, %cst_106 [1] : vector<8x8xf32> to vector<8xf32>
    %256 = vector.shape_cast %255 : vector<8xf32> to vector<8x1xf32>
    %257 = tpu.reciprocal %256 {approx = true} : vector<8x1xf32> -> vector<8x1xf32>
    %258 = vector.broadcast %257 : vector<8x1xf32> to vector<8x8xf32>
    %259 = arith.mulf %254, %258 : vector<8x8xf32>
    %cst_107 = arith.constant dense<0.000000e+00> : vector<8x32xf32>
    %260 = tpu.matmul %259, %231, %cst_107 {dimension_numbers = #tpu.dot_dimension_numbers<[1], [0], [0], [1], [0, 0, 1, 1], [], []>} : vector<8x8xf32>, vector<8x32xf32>, vector<8x32xf32> -> vector<8x32xf32>
    %cst_108 = arith.constant 0.000000e+00 : f32
    %261 = vector.broadcast %cst_108 : f32 to vector<8x32xf32>
    %262 = arith.cmpf ogt, %260, %261 : vector<8x32xf32>
    %263 = math.exp %260 : vector<8x32xf32>
    %cst_109 = arith.constant 1.000000e+00 : f32
    %264 = vector.broadcast %cst_109 : f32 to vector<8x32xf32>
    %265 = arith.subf %263, %264 : vector<8x32xf32>
    %266 = arith.select %262, %260, %265 : vector<8x32xi1>, vector<8x32xf32>
    %267 = tpu.concatenate %140, %266 in 0 : vector<8x32xf32>, vector<8x32xf32> -> vector<16x32xf32>
    %268 = arith.truncf %267 : vector<16x32xf32> to vector<16x32xbf16>
    %c0_110 = arith.constant 0 : index
    %c0_111 = arith.constant 0 : index
    %269 = vector.load %arg5[%c0_110, %c0_111] : memref<32x32xbf16, #tpu.memory_space<vmem>>, vector<32x32xbf16>
    %cst_112 = arith.constant dense<0.000000e+00> : vector<16x32xf32>
    %270 = tpu.matmul %268, %269, %cst_112 {dimension_numbers = #tpu.dot_dimension_numbers<[1], [0], [0], [1], [0, 0, 1, 1], [], []>} : vector<16x32xbf16>, vector<32x32xbf16>, vector<16x32xf32> -> vector<16x32xf32>
    %c0_113 = arith.constant 0 : index
    %c0_114 = arith.constant 0 : index
    %271 = vector.load %arg1[%c0_113, %c0_114] : memref<16x1xf32, #tpu.memory_space<vmem>>, vector<16x1xf32>
    %c0_115 = arith.constant 0 : index
    %c0_116 = arith.constant 0 : index
    %272 = vector.load %arg8[%c0_115, %c0_116] : memref<4x32xf32, #tpu.memory_space<vmem>>, vector<1x32xf32>
    %273 = vector.broadcast %271 : vector<16x1xf32> to vector<16x32xf32>
    %274 = vector.broadcast %272 : vector<1x32xf32> to vector<16x32xf32>
    %275 = arith.mulf %273, %274 : vector<16x32xf32>
    %276 = arith.addf %270, %275 : vector<16x32xf32>
    %c1_117 = arith.constant 1 : index
    %c0_118 = arith.constant 0 : index
    %277 = vector.load %arg8[%c1_117, %c0_118] : memref<4x32xf32, #tpu.memory_space<vmem>>, vector<1x32xf32>
    %278 = vector.broadcast %277 : vector<1x32xf32> to vector<16x32xf32>
    %279 = arith.addf %276, %278 : vector<16x32xf32>
    %cst_119 = arith.constant 0.000000e+00 : f32
    %280 = vector.broadcast %cst_119 : f32 to vector<16x32xf32>
    %281 = arith.maximumf %279, %280 : vector<16x32xf32>
    %282 = arith.truncf %281 : vector<16x32xf32> to vector<16x32xbf16>
    %c0_120 = arith.constant 0 : index
    %c0_121 = arith.constant 0 : index
    %283 = vector.load %arg6[%c0_120, %c0_121] : memref<32x32xbf16, #tpu.memory_space<vmem>>, vector<32x32xbf16>
    %cst_122 = arith.constant dense<0.000000e+00> : vector<16x32xf32>
    %284 = tpu.matmul %282, %283, %cst_122 {dimension_numbers = #tpu.dot_dimension_numbers<[1], [0], [0], [1], [0, 0, 1, 1], [], []>} : vector<16x32xbf16>, vector<32x32xbf16>, vector<16x32xf32> -> vector<16x32xf32>
    %c2_123 = arith.constant 2 : index
    %c0_124 = arith.constant 0 : index
    %285 = vector.load %arg8[%c2_123, %c0_124] : memref<4x32xf32, #tpu.memory_space<vmem>>, vector<1x32xf32>
    %286 = vector.broadcast %285 : vector<1x32xf32> to vector<16x32xf32>
    %287 = arith.addf %284, %286 : vector<16x32xf32>
    %cst_125 = arith.constant 0.000000e+00 : f32
    %288 = vector.broadcast %cst_125 : f32 to vector<16x32xf32>
    %289 = arith.maximumf %287, %288 : vector<16x32xf32>
    %c0_126 = arith.constant 0 : index
    %c0_127 = arith.constant 0 : index
    %290 = vector.load %arg7[%c0_126, %c0_127] : memref<1x32xf32, #tpu.memory_space<vmem>>, vector<1x32xf32>
    %cst_128 = arith.constant dense<0.000000e+00> : vector<1x16xf32>
    %291 = tpu.matmul %290, %289, %cst_128 {dimension_numbers = #tpu.dot_dimension_numbers<[1], [1], [0], [0], [0, 0, 1, 0], [], []>} : vector<1x32xf32>, vector<16x32xf32>, vector<1x16xf32> -> vector<1x16xf32>
    %c3_129 = arith.constant 3 : index
    %c0_130 = arith.constant 0 : index
    %292 = vector.load %arg8[%c3_129, %c0_130] : memref<4x32xf32, #tpu.memory_space<vmem>>, vector<1x1xf32>
    %293 = vector.broadcast %292 : vector<1x1xf32> to vector<1x16xf32>
    %294 = arith.addf %291, %293 : vector<1x16xf32>
    %295 = tpu.iota {dimensions = array<i32: 1>} : vector<1x16xi32>
    %cst_131 = arith.constant 0.000000e+00 : f32
    %296 = vector.broadcast %cst_131 : f32 to vector<1x16xf32>
    %c0_i32 = arith.constant 0 : i32
    %297 = vector.broadcast %c0_i32 : i32 to vector<1x16xi32>
    %298 = arith.cmpi sge, %295, %297 : vector<1x16xi32>
    %c5_i32_132 = arith.constant 5 : i32
    %299 = vector.broadcast %c5_i32_132 : i32 to vector<1x16xi32>
    %300 = arith.cmpi slt, %295, %299 : vector<1x16xi32>
    %301 = arith.andi %298, %300 : vector<1x16xi1>
    %cst_133 = arith.constant -9.000000e+15 : f32
    %302 = vector.broadcast %cst_133 : f32 to vector<1x16xf32>
    %303 = arith.select %301, %294, %302 : vector<1x16xi1>, vector<1x16xf32>
    %cst_134 = arith.constant dense<0xFF800000> : vector<1xf32>
    %304 = vector.multi_reduction <maximumf>, %303, %cst_134 [1] : vector<1x16xf32> to vector<1xf32>
    %305 = vector.shape_cast %304 : vector<1xf32> to vector<1x1xf32>
    %306 = vector.broadcast %305 : vector<1x1xf32> to vector<1x16xf32>
    %307 = arith.subf %303, %306 : vector<1x16xf32>
    %308 = math.exp %307 : vector<1x16xf32>
    %cst_135 = arith.constant 0.000000e+00 : f32
    %309 = vector.broadcast %cst_135 : f32 to vector<1x16xf32>
    %310 = arith.select %301, %308, %309 : vector<1x16xi1>, vector<1x16xf32>
    %cst_136 = arith.constant dense<0.000000e+00> : vector<1xf32>
    %311 = vector.multi_reduction <add>, %310, %cst_136 [1] : vector<1x16xf32> to vector<1xf32>
    %312 = vector.shape_cast %311 : vector<1xf32> to vector<1x1xf32>
    %313 = vector.broadcast %312 : vector<1x1xf32> to vector<1x16xf32>
    %314 = arith.divf %310, %313 : vector<1x16xf32>
    %315 = arith.addf %296, %314 : vector<1x16xf32>
    %c8_i32 = arith.constant 8 : i32
    %316 = vector.broadcast %c8_i32 : i32 to vector<1x16xi32>
    %317 = arith.cmpi sge, %295, %316 : vector<1x16xi32>
    %c13_i32 = arith.constant 13 : i32
    %318 = vector.broadcast %c13_i32 : i32 to vector<1x16xi32>
    %319 = arith.cmpi slt, %295, %318 : vector<1x16xi32>
    %320 = arith.andi %317, %319 : vector<1x16xi1>
    %cst_137 = arith.constant -9.000000e+15 : f32
    %321 = vector.broadcast %cst_137 : f32 to vector<1x16xf32>
    %322 = arith.select %320, %294, %321 : vector<1x16xi1>, vector<1x16xf32>
    %cst_138 = arith.constant dense<0xFF800000> : vector<1xf32>
    %323 = vector.multi_reduction <maximumf>, %322, %cst_138 [1] : vector<1x16xf32> to vector<1xf32>
    %324 = vector.shape_cast %323 : vector<1xf32> to vector<1x1xf32>
    %325 = vector.broadcast %324 : vector<1x1xf32> to vector<1x16xf32>
    %326 = arith.subf %322, %325 : vector<1x16xf32>
    %327 = math.exp %326 : vector<1x16xf32>
    %cst_139 = arith.constant 0.000000e+00 : f32
    %328 = vector.broadcast %cst_139 : f32 to vector<1x16xf32>
    %329 = arith.select %320, %327, %328 : vector<1x16xi1>, vector<1x16xf32>
    %cst_140 = arith.constant dense<0.000000e+00> : vector<1xf32>
    %330 = vector.multi_reduction <add>, %329, %cst_140 [1] : vector<1x16xf32> to vector<1xf32>
    %331 = vector.shape_cast %330 : vector<1xf32> to vector<1x1xf32>
    %332 = vector.broadcast %331 : vector<1x1xf32> to vector<1x16xf32>
    %333 = arith.divf %329, %332 : vector<1x16xf32>
    %334 = arith.addf %315, %333 : vector<1x16xf32>
    %c0_141 = arith.constant 0 : index
    %c0_142 = arith.constant 0 : index
    %335 = vector.load %arg14[%c0_141, %c0_142] : memref<1x16xf32, #tpu.memory_space<vmem>>, vector<1x16xf32>
    tpu.vector_store %arg14[%c0_141, %c0_142], %334 {strides = array<i32>} : memref<1x16xf32, #tpu.memory_space<vmem>>, vector<1x16xf32>,
    %c0_143 = arith.constant 0 : index
    %c0_144 = arith.constant 0 : index
    %336 = vector.load %arg9[%c0_143, %c0_144] : memref<32x256xbf16, #tpu.memory_space<vmem>>, vector<32x256xbf16>
    %cst_145 = arith.constant dense<0.000000e+00> : vector<16x256xf32>
    %337 = tpu.matmul %1, %336, %cst_145 {dimension_numbers = #tpu.dot_dimension_numbers<[1], [0], [0], [1], [0, 0, 1, 1], [], []>} : vector<16x32xbf16>, vector<32x256xbf16>, vector<16x256xf32> -> vector<16x256xf32>
    %c0_146 = arith.constant 0 : index
    %c0_147 = arith.constant 0 : index
    %338 = vector.load %arg12[%c0_146, %c0_147] : memref<2x256xf32, #tpu.memory_space<vmem>>, vector<1x256xf32>
    %339 = vector.broadcast %338 : vector<1x256xf32> to vector<16x256xf32>
    %340 = arith.addf %337, %339 : vector<16x256xf32>
    %cst_148 = arith.constant 0.000000e+00 : f32
    %341 = vector.broadcast %cst_148 : f32 to vector<16x256xf32>
    %342 = arith.maximumf %340, %341 : vector<16x256xf32>
    %343 = arith.truncf %342 : vector<16x256xf32> to vector<16x256xbf16>
    %c0_149 = arith.constant 0 : index
    %c0_150 = arith.constant 0 : index
    %344 = vector.load %arg10[%c0_149, %c0_150] : memref<256x256xbf16, #tpu.memory_space<vmem>>, vector<256x256xbf16>
    %cst_151 = arith.constant dense<0.000000e+00> : vector<16x256xf32>
    %345 = tpu.matmul %343, %344, %cst_151 {dimension_numbers = #tpu.dot_dimension_numbers<[1], [0], [0], [1], [0, 0, 1, 1], [], []>} : vector<16x256xbf16>, vector<256x256xbf16>, vector<16x256xf32> -> vector<16x256xf32>
    %c1_152 = arith.constant 1 : index
    %c0_153 = arith.constant 0 : index
    %346 = vector.load %arg12[%c1_152, %c0_153] : memref<2x256xf32, #tpu.memory_space<vmem>>, vector<1x256xf32>
    %347 = vector.broadcast %346 : vector<1x256xf32> to vector<16x256xf32>
    %348 = arith.addf %345, %347 : vector<16x256xf32>
    %cst_154 = arith.constant 0.000000e+00 : f32
    %349 = vector.broadcast %cst_154 : f32 to vector<16x256xf32>
    %350 = arith.maximumf %348, %349 : vector<16x256xf32>
    %351 = arith.truncf %350 : vector<16x256xf32> to vector<16x256xbf16>
    %c0_155 = arith.constant 0 : index
    %c0_156 = arith.constant 0 : index
    %352 = vector.load %arg11[%c0_155, %c0_156] : memref<256x8xbf16, #tpu.memory_space<vmem>>, vector<256x8xbf16>
    %cst_157 = arith.constant dense<0.000000e+00> : vector<16x8xf32>
    %353 = tpu.matmul %351, %352, %cst_157 {dimension_numbers = #tpu.dot_dimension_numbers<[1], [0], [0], [1], [0, 0, 1, 1], [], []>} : vector<16x256xbf16>, vector<256x8xbf16>, vector<16x8xf32> -> vector<16x8xf32>
    %c0_158 = arith.constant 0 : index
    %c0_159 = arith.constant 0 : index
    %354 = vector.load %arg13[%c0_158, %c0_159] : memref<1x8xf32, #tpu.memory_space<vmem>>, vector<1x8xf32>
    %355 = vector.broadcast %354 : vector<1x8xf32> to vector<16x8xf32>
    %356 = arith.addf %353, %355 : vector<16x8xf32>
    %cst_160 = arith.constant 0.000000e+00 : f32
    %357 = vector.broadcast %cst_160 : f32 to vector<16x8xf32>
    %358 = arith.subf %357, %356 : vector<16x8xf32>
    %359 = math.exp %358 : vector<16x8xf32>
    %cst_161 = arith.constant 1.000000e+00 : f32
    %360 = vector.broadcast %cst_161 : f32 to vector<16x8xf32>
    %361 = arith.addf %360, %359 : vector<16x8xf32>
    %cst_162 = arith.constant 1.000000e+00 : f32
    %362 = vector.broadcast %cst_162 : f32 to vector<16x8xf32>
    %363 = arith.divf %362, %361 : vector<16x8xf32>
    %c0_163 = arith.constant 0 : index
    %c0_164 = arith.constant 0 : index
    %364 = vector.load %arg15[%c0_163, %c0_164] : memref<16x8xf32, #tpu.memory_space<vmem>>, vector<16x8xf32>
    tpu.vector_store %arg15[%c0_163, %c0_164], %363 {strides = array<i32>} : memref<16x8xf32, #tpu.memory_space<vmem>>, vector<16x8xf32>,
    return
  }
}

</mosaic_0001>

<llo_original>
// kernel: tpu_custom_call.1
$region0: #{tpu_custom_call.1}
  #allocation0 [shape = 'u32[]', space=smem, size = 0x4, offset = 0x4, fixed_abs, tag = 'smem constant byte address 0x4 - core index']
  #allocation1 [shape = 'u32[72,128]{1,0:T(1,128)}', space=vmem, size = 0x9000, scoped, tag = 'internal scratch']
  %s0 = inlined_call_operand.vmem [shape: f32[16,32], index: 0, kind: input, shape index: {}]
  %s1 = inlined_call_operand.vmem [shape: f32[16,1], index: 1, kind: input, shape index: {}]
  %s2 = inlined_call_operand.vmem [shape: bf16[2,32,32], index: 2, kind: input, shape index: {}]
  %s3 = inlined_call_operand.vmem [shape: f32[6,32], index: 3, kind: input, shape index: {}]
  %s4 = inlined_call_operand.vmem [shape: bf16[64,32], index: 4, kind: input, shape index: {}]
  %s5 = inlined_call_operand.vmem [shape: bf16[32,32], index: 5, kind: input, shape index: {}]
  %s6 = inlined_call_operand.vmem [shape: bf16[32,32], index: 6, kind: input, shape index: {}]
  %s7 = inlined_call_operand.vmem [shape: f32[1,32], index: 7, kind: input, shape index: {}]
  %s8 = inlined_call_operand.vmem [shape: f32[4,32], index: 8, kind: input, shape index: {}]
  %s9 = inlined_call_operand.vmem [shape: bf16[32,256], index: 9, kind: input, shape index: {}]
  %s10 = inlined_call_operand.hbm [shape: bf16[256,256], index: 10, kind: input, shape index: {}]
  %s11 = inlined_call_operand.vmem [shape: bf16[256,8], index: 11, kind: input, shape index: {}]
  %s12 = inlined_call_operand.vmem [shape: f32[2,256], index: 12, kind: input, shape index: {}]
  %s13 = inlined_call_operand.vmem [shape: f32[1,8], index: 13, kind: input, shape index: {}]
  %s14 = inlined_call_operand.hbm [shape: f32[1,16], index: 14, kind: output, shape index: {0}]
  %s15 = inlined_call_operand.vmem [shape: f32[16,8], index: 15, kind: output, shape index: {1}]
  %16 = xla_tuple %s14, %s15
  %s17 = sld [smem:[#allocation0]]
  $region78: #{tpu_custom_call.1} parent=0
    _
  %s19 = ssub.s32 1, %s17
  %s20 = scalar_select 0, %s19, %s17
  $region1: #{tpu_custom_call.1} parent=0
    #allocation2 [shape = 'u8[131072]{0}', space=vmem, size = 0x20000, scoped, tag = 'input window, operand 10, single buffered']
    #allocation3 [shape = 's32[1]{0}', space=sflag, size = 0x4, scoped, tag = 'scoped memory for tpu_custom_call.1']
    #allocation4 [shape = 's32[1]{0}', space=sflag, size = 0x4, scoped, tag = 'scoped memory for tpu_custom_call.1']
    #allocation5 [shape = 'u8[512]{0}', space=vmem, size = 0x400, scoped, tag = 'output window, operand 0, single buffered']
    %21 = vsyncpa [#allocation3], 0
    %22 = vsyncpa [#allocation4], 0
    // Predicated region
    $region2: #{tpu_custom_call.1} parent=1 // pred_check
      _
    $region3: #{tpu_custom_call.1} parent=1 // pred_check_branch
      %24 = sbr.rel (0) target = $region5
    $region4: #{tpu_custom_call.1} parent=1 // pred_region
      _
    $region5: #{tpu_custom_call.1} parent=1 // pred_fallthru
      _
    // Predicated region
    $region6: #{tpu_custom_call.1} parent=1 // pred_check
      _
    $region7: #{tpu_custom_call.1} parent=1 // pred_check_branch
      %26 = sbr.rel (0) target = $region9
    $region8: #{tpu_custom_call.1} parent=1 // pred_region
      _
    $region9: #{tpu_custom_call.1} parent=1 // pred_fallthru
      _
    // Predicated region
    $region10: #{tpu_custom_call.1} parent=1 // pred_check
      _
    $region11: #{tpu_custom_call.1} parent=1 // pred_check_branch
      %28 = sbr.rel (0) target = $region13
    $region12: #{tpu_custom_call.1} parent=1 // pred_region
      _
    $region13: #{tpu_custom_call.1} parent=1 // pred_fallthru
      _
    // Predicated region
    $region14: #{tpu_custom_call.1} parent=1 // pred_check
      _
    $region15: #{tpu_custom_call.1} parent=1 // pred_check_branch
      %30 = sbr.rel (0) target = $region17
    $region16: #{tpu_custom_call.1} parent=1 // pred_region
      _
    $region17: #{tpu_custom_call.1} parent=1 // pred_fallthru
      _
    // Predicated region
    $region18: #{tpu_custom_call.1} parent=1 // pred_check
      _
    $region19: #{tpu_custom_call.1} parent=1 // pred_check_branch
      %32 = sbr.rel (0) target = $region21
    $region20: #{tpu_custom_call.1} parent=1 // pred_region
      _
    $region21: #{tpu_custom_call.1} parent=1 // pred_fallthru
      _
    // Predicated region
    $region22: #{tpu_custom_call.1} parent=1 // pred_check
      _
    $region23: #{tpu_custom_call.1} parent=1 // pred_check_branch
      %34 = sbr.rel (0) target = $region25
    $region24: #{tpu_custom_call.1} parent=1 // pred_region
      _
    $region25: #{tpu_custom_call.1} parent=1 // pred_fallthru
      _
    // Predicated region
    $region26: #{tpu_custom_call.1} parent=1 // pred_check
      _
    $region27: #{tpu_custom_call.1} parent=1 // pred_check_branch
      %36 = sbr.rel (0) target = $region29
    $region28: #{tpu_custom_call.1} parent=1 // pred_region
      _
    $region29: #{tpu_custom_call.1} parent=1 // pred_fallthru
      _
    // Predicated region
    $region30: #{tpu_custom_call.1} parent=1 // pred_check
      _
    $region31: #{tpu_custom_call.1} parent=1 // pred_check_branch
      %38 = sbr.rel (0) target = $region33
    $region32: #{tpu_custom_call.1} parent=1 // pred_region
      _
    $region33: #{tpu_custom_call.1} parent=1 // pred_fallthru
      _
    // Predicated region
    $region34: #{tpu_custom_call.1} parent=1 // pred_check
      _
    $region35: #{tpu_custom_call.1} parent=1 // pred_check_branch
      %40 = sbr.rel (0) target = $region37
    $region36: #{tpu_custom_call.1} parent=1 // pred_region
      _
    $region37: #{tpu_custom_call.1} parent=1 // pred_fallthru
      _
    // Predicated region
    $region38: #{tpu_custom_call.1} parent=1 // pred_check
      _
    $region39: #{tpu_custom_call.1} parent=1 // pred_check_branch
      %42 = sbr.rel (0) target = $region41
    $region40: #{tpu_custom_call.1} parent=1 // pred_region
      _
    $region41: #{tpu_custom_call.1} parent=1 // pred_fallthru
      _
    // Predicated region
    $region42: #{tpu_custom_call.1} parent=1 // pred_check
      _
    $region43: #{tpu_custom_call.1} parent=1 // pred_check_branch
      %44 = sbr.rel (0) target = $region45
    $region44: #{tpu_custom_call.1} parent=1 // pred_region
      %46 = vsyncadd [#allocation3], 0
      %s47 = sshll.u32 %s10, 4
      %s48 = int_to_ptr.hbm [resolvable:$true] %s47
      %s49 = sshll.u32 [#allocation2], 4
      %s50 = int_to_ptr.vmem [resolvable:$true] %s49
      %55 = dma.hbm_to_vmem [thread:$0]  %s48, 4096, %s50, [#allocation3], 128, 128, 8
    $region45: #{tpu_custom_call.1} parent=1 // pred_fallthru
      _
    // Predicated region
    $region46: #{tpu_custom_call.1} parent=1 // pred_check
      _
    $region47: #{tpu_custom_call.1} parent=1 // pred_check_branch
      %57 = sbr.rel (0) target = $region49
    $region48: #{tpu_custom_call.1} parent=1 // pred_region
      _
    $region49: #{tpu_custom_call.1} parent=1 // pred_fallthru
      _
    // Predicated region
    $region50: #{tpu_custom_call.1} parent=1 // pred_check
      _
    $region51: #{tpu_custom_call.1} parent=1 // pred_check_branch
      %59 = sbr.rel (0) target = $region53
    $region52: #{tpu_custom_call.1} parent=1 // pred_region
      _
    $region53: #{tpu_custom_call.1} parent=1 // pred_fallthru
      _
    // Predicated region
    $region54: #{tpu_custom_call.1} parent=1 // pred_check
      _
    $region55: #{tpu_custom_call.1} parent=1 // pred_check_branch
      %61 = sbr.rel (0) target = $region57
    $region56: #{tpu_custom_call.1} parent=1 // pred_region
      _
    $region57: #{tpu_custom_call.1} parent=1 // pred_fallthru
      _
    // Predicated region
    $region58: #{tpu_custom_call.1} parent=1 // pred_check
      _
    $region59: #{tpu_custom_call.1} parent=1 // pred_check_branch
      %63 = sbr.rel (0) target = $region61
    $region60: #{tpu_custom_call.1} parent=1 // pred_region
      %65 = dma.done [#allocation3], 4096
    $region61: #{tpu_custom_call.1} parent=1 // pred_fallthru
      _
    %v67 = vld [vmem:[%s0] sm:$0xff]
    %v68 = vld [vmem:[%s0 + $0x8] sm:$0xff]
    %v69 = vpack.c.bf16 %v68, %v67
    %v70 = vld [vmem:[%s2] sm:$0xf]
    %v71 = vld [vmem:[%s2 + $0x4] sm:$0xf]
    %v72 = vld [vmem:[%s2 + $0x8] sm:$0xf]
    %v73 = vld [vmem:[%s2 + $0xc] sm:$0xf]
    %v78 = vunpack.c.l.b16 %v70
    %v79 = vunpack.c.l.b16 %v71
    %v80 = vunpack.c.l.b16 %v72
    %v81 = vunpack.c.l.b16 %v73
    %v82 = vpack.c.b16 %v79, %v78
    %v83 = vpack.c.b16 %v81, %v80
    %vm86 = vcmask 261120
    %v88 = vsel %vm86, %v69, 0
    %90 = vmatpush.bf16.msra.mxu0 0
    %91 = vmatpush.bf16.msra.mxu0 0
    %92 = vmatpush.bf16.msra.mxu0 0
    %93 = vmatpush.bf16.msra.mxu0 0
    %94 = vmatpush.bf16.msra.mxu0 0
    %95 = vmatpush.bf16.msra.mxu0 0
    %96 = vmatpush.bf16.msra.mxu0 %v83
    %97 = vmatpush.bf16.msra.mxu0 %v82
    %98 = vmatmul.bf16.gmra.mxu0 %v88
    %v99 = vpop.f32.mrf.mxu0
    %v100 = vadd.f32 0.0, %v99
    %v101 = vpop.f32.mrf.mxu0
    %v102 = vadd.f32 0.0, %v101
    %103 = vdwg.mxu0
    %v104 = vld [vmem:[%s3] sm:$0x1]
    %v105 = vperm.slane %v104, 0
    %v106 = vmul.f32 %v100, %v105
    %v107 = vmul.f32 %v102, %v105
    %v108 = vsel %vm86, %v106, 0.0
    %109 = vadd.xlane.f32.xlu0 %v108
    %v110 = vpop.xlane.xlu0 %109
    %v111 = vsel %vm86, %v107, 0.0
    %112 = vadd.xlane.f32.xlu0 %v111
    %v113 = vpop.xlane.xlu0 %112
    %s114 = scalar_lea.vmem %s2, 16
    %v115 = vld [vmem:[%s114] sm:$0xf]
    %v116 = vld [vmem:[%s114 + $0x4] sm:$0xf]
    %v117 = vld [vmem:[%s114 + $0x8] sm:$0xf]
    %v118 = vld [vmem:[%s114 + $0xc] sm:$0xf]
    %v123 = vunpack.c.l.b16 %v115
    %v124 = vunpack.c.l.b16 %v116
    %v125 = vunpack.c.l.b16 %v117
    %v126 = vunpack.c.l.b16 %v118
    %v127 = vpack.c.b16 %v124, %v123
    %v128 = vpack.c.b16 %v126, %v125
    %131 = vmatpush.bf16.msra.mxu0 0
    %132 = vmatpush.bf16.msra.mxu0 0
    %133 = vmatpush.bf16.msra.mxu0 0
    %134 = vmatpush.bf16.msra.mxu0 0
    %135 = vmatpush.bf16.msra.mxu0 0
    %136 = vmatpush.bf16.msra.mxu0 0
    %137 = vmatpush.bf16.msra.mxu0 %v128
    %138 = vmatpush.bf16.msra.mxu0 %v127
    %139 = vmatmul.bf16.gmra.mxu0 %v88
    %v140 = vpop.f32.mrf.mxu0
    %v141 = vadd.f32 0.0, %v140
    %v142 = vpop.f32.mrf.mxu0
    %v143 = vadd.f32 0.0, %v142
    %144 = vdwg.mxu0
    %v145 = vld [vmem:[%s3 + $0x1] sm:$0x1]
    %v146 = vperm.slane %v145, 0
    %v147 = vmul.f32 %v141, %v146
    %v148 = vmul.f32 %v143, %v146
    %v149 = vsel %vm86, %v147, 0.0
    %150 = vadd.xlane.f32.xlu0 %v149
    %v151 = vpop.xlane.xlu0 %150
    %v152 = vsel %vm86, %v148, 0.0
    %153 = vadd.xlane.f32.xlu0 %v152
    %v154 = vpop.xlane.xlu0 %153
    %v155 = vlaneseq
    %v156 = vand.u32 %v155, 127
    %vm157 = vcmp.lt.s32.totalorder %v156, 5
    %v158 = vsel %vm86, %v67, 0.0
    %159 = vadd.xlane.f32.xlu0 %v158
    %v160 = vpop.xlane.xlu0 %159
    %v161 = vrcp.pop 32.0
    %v162 = vmul.f32 32.0, %v161
    %v163 = vsub.f32 1.0, %v162
    %v164 = vmul.f32 %v161, %v163
    %v165 = vadd.f32 %v161, %v164
    %vm166 = vweird.f32 %v161
    %v167 = vsel %vm166, %v161, %v165
    %v168 = vmul.f32 %v160, %v167
    %v169 = vsub.f32 %v67, %v168
    %v171 = vsel %vm86, %v169, 0
    %173 = vmatpush.xpose.msra.mxu0 0.0
    %174 = vmatpush.xpose.msra.mxu0 0.0
    %175 = vmatpush.xpose.msra.mxu0 0.0
    %176 = vmatpush.xpose.msra.mxu0 0.0
    %177 = vmatpush.xpose.msra.mxu0 0.0
    %178 = vmatpush.xpose.msra.mxu0 0.0
    %179 = vmatpush.xpose.msra.mxu0 0.0
    %180 = vmatpush.xpose.msra.mxu0 0.0
    %181 = vmatpush.xpose.msra.mxu0 0.0
    %182 = vmatpush.xpose.msra.mxu0 0.0
    %183 = vmatpush.xpose.msra.mxu0 0.0
    %184 = vmatpush.xpose.msra.mxu0 0.0
    %185 = vmatpush.xpose.msra.mxu0 0.0
    %186 = vmatpush.xpose.msra.mxu0 0.0
    %187 = vmatpush.xpose.msra.mxu0 0.0
    %188 = vmatpush.xpose.msra.mxu0 %v171
    %189 = vmatmul.f32.gmra.mxu0 %v171
    %v190 = vpop.f32.mrf.mxu0
    %v191 = vadd.f32 0.0, %v190
    %192 = vdwg.mxu0
    %v193 = vmul.f32 %v191, 0.032258064
    %vm194 = vcmp.gt.f32.partialorder %v193, 0.0
    %v195 = vld [vmem:[%s3 + $0x2] sm:$0x1]
    %v197 = vsel %vm86, %v195, 0
    %v200 = vsel %vm86, %v100, 0
    %202 = vmatpush.xpose.msra.mxu0 0.0
    %203 = vmatpush.xpose.msra.mxu0 0.0
    %204 = vmatpush.xpose.msra.mxu0 0.0
    %205 = vmatpush.xpose.msra.mxu0 0.0
    %206 = vmatpush.xpose.msra.mxu0 0.0
    %207 = vmatpush.xpose.msra.mxu0 0.0
    %208 = vmatpush.xpose.msra.mxu0 0.0
    %209 = vmatpush.xpose.msra.mxu0 0.0
    %210 = vmatpush.xpose.msra.mxu0 0.0
    %211 = vmatpush.xpose.msra.mxu0 0.0
    %212 = vmatpush.xpose.msra.mxu0 0.0
    %213 = vmatpush.xpose.msra.mxu0 0.0
    %214 = vmatpush.xpose.msra.mxu0 0.0
    %215 = vmatpush.xpose.msra.mxu0 0.0
    %216 = vmatpush.xpose.msra.mxu0 0.0
    %217 = vmatpush.xpose.msra.mxu0 %v200
    %218 = vmatmul.f32.gmra.mxu0 %v197
    %v219 = vpop.f32.mrf.mxu0
    %v220 = vadd.f32 0.0, %v219
    %221 = vdwg.mxu0
    %v222 = vperm.slane %v220, 0
    %v223 = vadd.f32 %v110, %v222
    %vm224 = vcmp.gt.f32.partialorder %v223, 0.0
    %v225 = vmul.f32 %v223, 0.2
    %v226 = vsel %vm224, %v223, %v225
    %v227 = vsel %vm194, %v226, -9e+15
    %vm228 = vcmask 64512
    %v229 = vsel %vm228, %v227, -inf
    %230 = vmax.xlane.f32.xlu0 %v229
    %v231 = vpop.xlane.xlu0 %230
    %v232 = vsub.f32 %v227, %v231
    %v233 = vmul.f32 %v232, 1.442695
    %v234 = vpow.pop %v233
    %v235 = vsel %vm157, 1, 0
    %vm236 = vcmp.eq.s32.totalorder %v235, 1
    %v237 = vsel %vm236, %v234, 0.0
    %v238 = vsel %vm228, %v237, 0.0
    %239 = vadd.xlane.f32.xlu0 %v238
    %v240 = vpop.xlane.xlu0 %239
    %v241 = vrcp.pop %v240
    %v242 = vmul.f32 %v237, %v241
    %v244 = vsel %vm228, %v242, 0
    %246 = vmatpush.msra.mxu0 0.0
    %247 = vmatpush.msra.mxu0 0.0
    %248 = vmatpush.msra.mxu0 0.0
    %249 = vmatpush.msra.mxu0 0.0
    %250 = vmatpush.msra.mxu0 0.0
    %251 = vmatpush.msra.mxu0 0.0
    %252 = vmatpush.msra.mxu0 0.0
    %253 = vmatpush.msra.mxu0 0.0
    %254 = vmatpush.msra.mxu0 0.0
    %255 = vmatpush.msra.mxu0 0.0
    %256 = vmatpush.msra.mxu0 0.0
    %257 = vmatpush.msra.mxu0 0.0
    %258 = vmatpush.msra.mxu0 0.0
    %259 = vmatpush.msra.mxu0 0.0
    %260 = vmatpush.msra.mxu0 0.0
    %261 = vmatpush.msra.mxu0 %v100
    %262 = vmatmul.f32.gmra.mxu0 %v244
    %v263 = vpop.f32.mrf.mxu0
    %v264 = vadd.f32 0.0, %v263
    %265 = vdwg.mxu0
    %vm266 = vcmp.gt.f32.partialorder %v264, 0.0
    %v267 = vmul.f32 %v264, 1.442695
    %v268 = vpow.pop %v267
    %v269 = vsub.f32 %v268, 1.0
    %v270 = vsel %vm266, %v264, %v269
    %v271 = vpack.c.bf16 %v270, %v270
    %v272 = vld [vmem:[%s4] sm:$0xf]
    %v273 = vld [vmem:[%s4 + $0x4] sm:$0xf]
    %v274 = vld [vmem:[%s4 + $0x8] sm:$0xf]
    %v275 = vld [vmem:[%s4 + $0xc] sm:$0xf]
    %v276 = vld [vmem:[%s3 + $0x3] sm:$0x1]
    %v278 = vsel %vm86, %v276, 0
    %v281 = vsel %vm86, %v141, 0
    %283 = vmatpush.xpose.msra.mxu0 0.0
    %284 = vmatpush.xpose.msra.mxu0 0.0
    %285 = vmatpush.xpose.msra.mxu0 0.0
    %286 = vmatpush.xpose.msra.mxu0 0.0
    %287 = vmatpush.xpose.msra.mxu0 0.0
    %288 = vmatpush.xpose.msra.mxu0 0.0
    %289 = vmatpush.xpose.msra.mxu0 0.0
    %290 = vmatpush.xpose.msra.mxu0 0.0
    %291 = vmatpush.xpose.msra.mxu0 0.0
    %292 = vmatpush.xpose.msra.mxu0 0.0
    %293 = vmatpush.xpose.msra.mxu0 0.0
    %294 = vmatpush.xpose.msra.mxu0 0.0
    %295 = vmatpush.xpose.msra.mxu0 0.0
    %296 = vmatpush.xpose.msra.mxu0 0.0
    %297 = vmatpush.xpose.msra.mxu0 0.0
    %298 = vmatpush.xpose.msra.mxu0 %v281
    %299 = vmatmul.f32.gmra.mxu0 %v278
    %v300 = vpop.f32.mrf.mxu0
    %v301 = vadd.f32 0.0, %v300
    %302 = vdwg.mxu0
    %v303 = vperm.slane %v301, 0
    %v304 = vadd.f32 %v151, %v303
    %vm305 = vcmp.gt.f32.partialorder %v304, 0.0
    %v306 = vmul.f32 %v304, 0.2
    %v307 = vsel %vm305, %v304, %v306
    %v308 = vsel %vm194, %v307, -9e+15
    %v309 = vsel %vm228, %v308, -inf
    %310 = vmax.xlane.f32.xlu0 %v309
    %v311 = vpop.xlane.xlu0 %310
    %v312 = vsub.f32 %v308, %v311
    %v313 = vmul.f32 %v312, 1.442695
    %v314 = vpow.pop %v313
    %v315 = vsel %vm236, %v314, 0.0
    %v316 = vsel %vm228, %v315, 0.0
    %317 = vadd.xlane.f32.xlu0 %v316
    %v318 = vpop.xlane.xlu0 %317
    %v319 = vrcp.pop %v318
    %v320 = vmul.f32 %v315, %v319
    %v322 = vsel %vm228, %v320, 0
    %324 = vmatpush.msra.mxu0 0.0
    %325 = vmatpush.msra.mxu0 0.0
    %326 = vmatpush.msra.mxu0 0.0
    %327 = vmatpush.msra.mxu0 0.0
    %328 = vmatpush.msra.mxu0 0.0
    %329 = vmatpush.msra.mxu0 0.0
    %330 = vmatpush.msra.mxu0 0.0
    %331 = vmatpush.msra.mxu0 0.0
    %332 = vmatpush.msra.mxu0 0.0
    %333 = vmatpush.msra.mxu0 0.0
    %334 = vmatpush.msra.mxu0 0.0
    %335 = vmatpush.msra.mxu0 0.0
    %336 = vmatpush.msra.mxu0 0.0
    %337 = vmatpush.msra.mxu0 0.0
    %338 = vmatpush.msra.mxu0 0.0
    %339 = vmatpush.msra.mxu0 %v141
    %340 = vmatmul.f32.gmra.mxu0 %v322
    %v341 = vpop.f32.mrf.mxu0
    %v342 = vadd.f32 0.0, %v341
    %343 = vdwg.mxu0
    %vm344 = vcmp.gt.f32.partialorder %v342, 0.0
    %v345 = vmul.f32 %v342, 1.442695
    %v346 = vpow.pop %v345
    %v347 = vsub.f32 %v346, 1.0
    %v348 = vsel %vm344, %v342, %v347
    %v349 = vpack.c.bf16 %v348, %v348
    %v350 = vld [vmem:[%s4 + $0x10] sm:$0xf]
    %v351 = vld [vmem:[%s4 + $0x14] sm:$0xf]
    %v352 = vld [vmem:[%s4 + $0x18] sm:$0xf]
    %v353 = vld [vmem:[%s4 + $0x1c] sm:$0xf]
    %v358 = vunpack.c.l.b16 %v350
    %v359 = vunpack.c.l.b16 %v351
    %v360 = vunpack.c.l.b16 %v352
    %v361 = vunpack.c.l.b16 %v353
    %v362 = vpack.c.b16 %v359, %v358
    %v363 = vpack.c.b16 %v361, %v360
    %v367 = vsel %vm86, %v349, 0
    %369 = vmatpush.bf16.msra.mxu0 0
    %370 = vmatpush.bf16.msra.mxu0 0
    %371 = vmatpush.bf16.msra.mxu0 0
    %372 = vmatpush.bf16.msra.mxu0 0
    %373 = vmatpush.bf16.msra.mxu0 0
    %374 = vmatpush.bf16.msra.mxu0 0
    %375 = vmatpush.bf16.msra.mxu0 %v363
    %376 = vmatpush.bf16.msra.mxu0 %v362
    %377 = vmatmul.bf16.gmra.mxu0 %v367
    %v378 = vpop.f32.mrf.mxu0
    %v379 = vadd.f32 0.0, %v378
    %v380 = vpop.f32.mrf.mxu0
    %381 = vdwg.mxu0
    %v386 = vunpack.c.l.b16 %v272
    %v387 = vunpack.c.l.b16 %v273
    %v388 = vunpack.c.l.b16 %v274
    %v389 = vunpack.c.l.b16 %v275
    %v390 = vpack.c.b16 %v387, %v386
    %v391 = vpack.c.b16 %v389, %v388
    %v395 = vsel %vm86, %v271, 0
    %397 = vmatpush.bf16.msra.mxu0 0
    %398 = vmatpush.bf16.msra.mxu0 0
    %399 = vmatpush.bf16.msra.mxu0 0
    %400 = vmatpush.bf16.msra.mxu0 0
    %401 = vmatpush.bf16.msra.mxu0 0
    %402 = vmatpush.bf16.msra.mxu0 0
    %403 = vmatpush.bf16.msra.mxu0 %v391
    %404 = vmatpush.bf16.msra.mxu0 %v390
    %405 = vmatmul.bf16.gmra.mxu0 %v395
    %v406 = vpop.f32.mrf.mxu0
    %v407 = vadd.f32 %v379, %v406
    %v408 = vpop.f32.mrf.mxu0
    %409 = vdwg.mxu0
    %v410 = vld [vmem:[%s3 + $0x4] sm:$0x1]
    %v411 = vperm.slane %v410, 0
    %v412 = vmul.f32 %v407, %v411
    %v413 = vsel %vm86, %v412, 0.0
    %414 = vadd.xlane.f32.xlu0 %v413
    %v415 = vpop.xlane.xlu0 %414
    %v416 = vld [vmem:[%s3 + $0x5] sm:$0x1]
    %v418 = vsel %vm86, %v416, 0
    %v421 = vsel %vm86, %v407, 0
    %423 = vmatpush.xpose.msra.mxu0 0.0
    %424 = vmatpush.xpose.msra.mxu0 0.0
    %425 = vmatpush.xpose.msra.mxu0 0.0
    %426 = vmatpush.xpose.msra.mxu0 0.0
    %427 = vmatpush.xpose.msra.mxu0 0.0
    %428 = vmatpush.xpose.msra.mxu0 0.0
    %429 = vmatpush.xpose.msra.mxu0 0.0
    %430 = vmatpush.xpose.msra.mxu0 0.0
    %431 = vmatpush.xpose.msra.mxu0 0.0
    %432 = vmatpush.xpose.msra.mxu0 0.0
    %433 = vmatpush.xpose.msra.mxu0 0.0
    %434 = vmatpush.xpose.msra.mxu0 0.0
    %435 = vmatpush.xpose.msra.mxu0 0.0
    %436 = vmatpush.xpose.msra.mxu0 0.0
    %437 = vmatpush.xpose.msra.mxu0 0.0
    %438 = vmatpush.xpose.msra.mxu0 %v421
    %439 = vmatmul.f32.gmra.mxu0 %v418
    %v440 = vpop.f32.mrf.mxu0
    %v441 = vadd.f32 0.0, %v440
    %442 = vdwg.mxu0
    %v443 = vperm.slane %v441, 0
    %v444 = vadd.f32 %v415, %v443
    %vm445 = vcmp.gt.f32.partialorder %v444, 0.0
    %v446 = vmul.f32 %v444, 0.2
    %v447 = vsel %vm445, %v444, %v446
    %v448 = vsel %vm194, %v447, -9e+15
    %v449 = vsel %vm228, %v448, -inf
    %450 = vmax.xlane.f32.xlu0 %v449
    %v451 = vpop.xlane.xlu0 %450
    %v452 = vsub.f32 %v448, %v451
    %v453 = vmul.f32 %v452, 1.442695
    %v454 = vpow.pop %v453
    %v455 = vsel %vm236, %v454, 0.0
    %v456 = vsel %vm228, %v455, 0.0
    %457 = vadd.xlane.f32.xlu0 %v456
    %v458 = vpop.xlane.xlu0 %457
    %v459 = vrcp.pop %v458
    %v460 = vmul.f32 %v455, %v459
    %v462 = vsel %vm228, %v460, 0
    %464 = vmatpush.msra.mxu0 0.0
    %465 = vmatpush.msra.mxu0 0.0
    %466 = vmatpush.msra.mxu0 0.0
    %467 = vmatpush.msra.mxu0 0.0
    %468 = vmatpush.msra.mxu0 0.0
    %469 = vmatpush.msra.mxu0 0.0
    %470 = vmatpush.msra.mxu0 0.0
    %471 = vmatpush.msra.mxu0 0.0
    %472 = vmatpush.msra.mxu0 0.0
    %473 = vmatpush.msra.mxu0 0.0
    %474 = vmatpush.msra.mxu0 0.0
    %475 = vmatpush.msra.mxu0 0.0
    %476 = vmatpush.msra.mxu0 0.0
    %477 = vmatpush.msra.mxu0 0.0
    %478 = vmatpush.msra.mxu0 0.0
    %479 = vmatpush.msra.mxu0 %v407
    %480 = vmatmul.f32.gmra.mxu0 %v462
    %v481 = vpop.f32.mrf.mxu0
    %v482 = vadd.f32 0.0, %v481
    %483 = vdwg.mxu0
    %vm484 = vcmp.gt.f32.partialorder %v482, 0.0
    %v485 = vmul.f32 %v482, 1.442695
    %v486 = vpow.pop %v485
    %v487 = vsub.f32 %v486, 1.0
    %v488 = vsel %vm484, %v482, %v487
    %v489 = vsel %vm86, %v68, 0.0
    %490 = vadd.xlane.f32.xlu0 %v489
    %v491 = vpop.xlane.xlu0 %490
    %v492 = vmul.f32 %v491, %v167
    %v493 = vsub.f32 %v68, %v492
    %v495 = vsel %vm86, %v493, 0
    %497 = vmatpush.xpose.msra.mxu0 0.0
    %498 = vmatpush.xpose.msra.mxu0 0.0
    %499 = vmatpush.xpose.msra.mxu0 0.0
    %500 = vmatpush.xpose.msra.mxu0 0.0
    %501 = vmatpush.xpose.msra.mxu0 0.0
    %502 = vmatpush.xpose.msra.mxu0 0.0
    %503 = vmatpush.xpose.msra.mxu0 0.0
    %504 = vmatpush.xpose.msra.mxu0 0.0
    %505 = vmatpush.xpose.msra.mxu0 0.0
    %506 = vmatpush.xpose.msra.mxu0 0.0
    %507 = vmatpush.xpose.msra.mxu0 0.0
    %508 = vmatpush.xpose.msra.mxu0 0.0
    %509 = vmatpush.xpose.msra.mxu0 0.0
    %510 = vmatpush.xpose.msra.mxu0 0.0
    %511 = vmatpush.xpose.msra.mxu0 0.0
    %512 = vmatpush.xpose.msra.mxu0 %v495
    %513 = vmatmul.f32.gmra.mxu0 %v495
    %v514 = vpop.f32.mrf.mxu0
    %v515 = vadd.f32 0.0, %v514
    %516 = vdwg.mxu0
    %v517 = vmul.f32 %v515, 0.032258064
    %vm518 = vcmp.gt.f32.partialorder %v517, 0.0
    %v520 = vsel %vm86, %v102, 0
    %522 = vmatpush.xpose.msra.mxu0 0.0
    %523 = vmatpush.xpose.msra.mxu0 0.0
    %524 = vmatpush.xpose.msra.mxu0 0.0
    %525 = vmatpush.xpose.msra.mxu0 0.0
    %526 = vmatpush.xpose.msra.mxu0 0.0
    %527 = vmatpush.xpose.msra.mxu0 0.0
    %528 = vmatpush.xpose.msra.mxu0 0.0
    %529 = vmatpush.xpose.msra.mxu0 0.0
    %530 = vmatpush.xpose.msra.mxu0 0.0
    %531 = vmatpush.xpose.msra.mxu0 0.0
    %532 = vmatpush.xpose.msra.mxu0 0.0
    %533 = vmatpush.xpose.msra.mxu0 0.0
    %534 = vmatpush.xpose.msra.mxu0 0.0
    %535 = vmatpush.xpose.msra.mxu0 0.0
    %536 = vmatpush.xpose.msra.mxu0 0.0
    %537 = vmatpush.xpose.msra.mxu0 %v520
    %538 = vmatmul.f32.gmra.mxu0 %v197
    %v539 = vpop.f32.mrf.mxu0
    %v540 = vadd.f32 0.0, %v539
    %541 = vdwg.mxu0
    %v542 = vperm.slane %v540, 0
    %v543 = vadd.f32 %v113, %v542
    %vm544 = vcmp.gt.f32.partialorder %v543, 0.0
    %v545 = vmul.f32 %v543, 0.2
    %v546 = vsel %vm544, %v543, %v545
    %v547 = vsel %vm518, %v546, -9e+15
    %v548 = vsel %vm228, %v547, -inf
    %549 = vmax.xlane.f32.xlu0 %v548
    %v550 = vpop.xlane.xlu0 %549
    %v551 = vsub.f32 %v547, %v550
    %v552 = vmul.f32 %v551, 1.442695
    %v553 = vpow.pop %v552
    %v554 = vsel %vm236, %v553, 0.0
    %v555 = vsel %vm228, %v554, 0.0
    %556 = vadd.xlane.f32.xlu0 %v555
    %v557 = vpop.xlane.xlu0 %556
    %v558 = vrcp.pop %v557
    %v559 = vmul.f32 %v554, %v558
    %v561 = vsel %vm228, %v559, 0
    %563 = vmatpush.msra.mxu0 0.0
    %564 = vmatpush.msra.mxu0 0.0
    %565 = vmatpush.msra.mxu0 0.0
    %566 = vmatpush.msra.mxu0 0.0
    %567 = vmatpush.msra.mxu0 0.0
    %568 = vmatpush.msra.mxu0 0.0
    %569 = vmatpush.msra.mxu0 0.0
    %570 = vmatpush.msra.mxu0 0.0
    %571 = vmatpush.msra.mxu0 0.0
    %572 = vmatpush.msra.mxu0 0.0
    %573 = vmatpush.msra.mxu0 0.0
    %574 = vmatpush.msra.mxu0 0.0
    %575 = vmatpush.msra.mxu0 0.0
    %576 = vmatpush.msra.mxu0 0.0
    %577 = vmatpush.msra.mxu0 0.0
    %578 = vmatpush.msra.mxu0 %v102
    %579 = vmatmul.f32.gmra.mxu0 %v561
    %v580 = vpop.f32.mrf.mxu0
    %v581 = vadd.f32 0.0, %v580
    %582 = vdwg.mxu0
    %vm583 = vcmp.gt.f32.partialorder %v581, 0.0
    %v584 = vmul.f32 %v581, 1.442695
    %v585 = vpow.pop %v584
    %v586 = vsub.f32 %v585, 1.0
    %v587 = vsel %vm583, %v581, %v586
    %v588 = vpack.c.bf16 %v587, %v587
    %v590 = vsel %vm86, %v143, 0
    %592 = vmatpush.xpose.msra.mxu0 0.0
    %593 = vmatpush.xpose.msra.mxu0 0.0
    %594 = vmatpush.xpose.msra.mxu0 0.0
    %595 = vmatpush.xpose.msra.mxu0 0.0
    %596 = vmatpush.xpose.msra.mxu0 0.0
    %597 = vmatpush.xpose.msra.mxu0 0.0
    %598 = vmatpush.xpose.msra.mxu0 0.0
    %599 = vmatpush.xpose.msra.mxu0 0.0
    %600 = vmatpush.xpose.msra.mxu0 0.0
    %601 = vmatpush.xpose.msra.mxu0 0.0
    %602 = vmatpush.xpose.msra.mxu0 0.0
    %603 = vmatpush.xpose.msra.mxu0 0.0
    %604 = vmatpush.xpose.msra.mxu0 0.0
    %605 = vmatpush.xpose.msra.mxu0 0.0
    %606 = vmatpush.xpose.msra.mxu0 0.0
    %607 = vmatpush.xpose.msra.mxu0 %v590
    %608 = vmatmul.f32.gmra.mxu0 %v278
    %v609 = vpop.f32.mrf.mxu0
    %v610 = vadd.f32 0.0, %v609
    %611 = vdwg.mxu0
    %v612 = vperm.slane %v610, 0
    %v613 = vadd.f32 %v154, %v612
    %vm614 = vcmp.gt.f32.partialorder %v613, 0.0
    %v615 = vmul.f32 %v613, 0.2
    %v616 = vsel %vm614, %v613, %v615
    %v617 = vsel %vm518, %v616, -9e+15
    %v618 = vsel %vm228, %v617, -inf
    %619 = vmax.xlane.f32.xlu0 %v618
    %v620 = vpop.xlane.xlu0 %619
    %v621 = vsub.f32 %v617, %v620
    %v622 = vmul.f32 %v621, 1.442695
    %v623 = vpow.pop %v622
    %v624 = vsel %vm236, %v623, 0.0
    %v625 = vsel %vm228, %v624, 0.0
    %626 = vadd.xlane.f32.xlu0 %v625
    %v627 = vpop.xlane.xlu0 %626
    %v628 = vrcp.pop %v627
    %v629 = vmul.f32 %v624, %v628
    %v631 = vsel %vm228, %v629, 0
    %633 = vmatpush.msra.mxu0 0.0
    %634 = vmatpush.msra.mxu0 0.0
    %635 = vmatpush.msra.mxu0 0.0
    %636 = vmatpush.msra.mxu0 0.0
    %637 = vmatpush.msra.mxu0 0.0
    %638 = vmatpush.msra.mxu0 0.0
    %639 = vmatpush.msra.mxu0 0.0
    %640 = vmatpush.msra.mxu0 0.0
    %641 = vmatpush.msra.mxu0 0.0
    %642 = vmatpush.msra.mxu0 0.0
    %643 = vmatpush.msra.mxu0 0.0
    %644 = vmatpush.msra.mxu0 0.0
    %645 = vmatpush.msra.mxu0 0.0
    %646 = vmatpush.msra.mxu0 0.0
    %647 = vmatpush.msra.mxu0 0.0
    %648 = vmatpush.msra.mxu0 %v143
    %649 = vmatmul.f32.gmra.mxu0 %v631
    %v650 = vpop.f32.mrf.mxu0
    %v651 = vadd.f32 0.0, %v650
    %652 = vdwg.mxu0
    %vm653 = vcmp.gt.f32.partialorder %v651, 0.0
    %v654 = vmul.f32 %v651, 1.442695
    %v655 = vpow.pop %v654
    %v656 = vsub.f32 %v655, 1.0
    %v657 = vsel %vm653, %v651, %v656
    %v658 = vpack.c.bf16 %v657, %v657
    %v660 = vsel %vm86, %v658, 0
    %662 = vmatpush.bf16.msra.mxu0 0
    %663 = vmatpush.bf16.msra.mxu0 0
    %664 = vmatpush.bf16.msra.mxu0 0
    %665 = vmatpush.bf16.msra.mxu0 0
    %666 = vmatpush.bf16.msra.mxu0 0
    %667 = vmatpush.bf16.msra.mxu0 0
    %668 = vmatpush.bf16.msra.mxu0 %v363
    %669 = vmatpush.bf16.msra.mxu0 %v362
    %670 = vmatmul.bf16.gmra.mxu0 %v660
    %v671 = vpop.f32.mrf.mxu0
    %v672 = vadd.f32 0.0, %v671
    %v673 = vpop.f32.mrf.mxu0
    %674 = vdwg.mxu0
    %v676 = vsel %vm86, %v588, 0
    %678 = vmatpush.bf16.msra.mxu0 0
    %679 = vmatpush.bf16.msra.mxu0 0
    %680 = vmatpush.bf16.msra.mxu0 0
    %681 = vmatpush.bf16.msra.mxu0 0
    %682 = vmatpush.bf16.msra.mxu0 0
    %683 = vmatpush.bf16.msra.mxu0 0
    %684 = vmatpush.bf16.msra.mxu0 %v391
    %685 = vmatpush.bf16.msra.mxu0 %v390
    %686 = vmatmul.bf16.gmra.mxu0 %v676
    %v687 = vpop.f32.mrf.mxu0
    %v688 = vadd.f32 %v672, %v687
    %v689 = vpop.f32.mrf.mxu0
    %690 = vdwg.mxu0
    %v691 = vmul.f32 %v688, %v411
    %v692 = vsel %vm86, %v691, 0.0
    %693 = vadd.xlane.f32.xlu0 %v692
    %v694 = vpop.xlane.xlu0 %693
    %v696 = vsel %vm86, %v688, 0
    %698 = vmatpush.xpose.msra.mxu0 0.0
    %699 = vmatpush.xpose.msra.mxu0 0.0
    %700 = vmatpush.xpose.msra.mxu0 0.0
    %701 = vmatpush.xpose.msra.mxu0 0.0
    %702 = vmatpush.xpose.msra.mxu0 0.0
    %703 = vmatpush.xpose.msra.mxu0 0.0
    %704 = vmatpush.xpose.msra.mxu0 0.0
    %705 = vmatpush.xpose.msra.mxu0 0.0
    %706 = vmatpush.xpose.msra.mxu0 0.0
    %707 = vmatpush.xpose.msra.mxu0 0.0
    %708 = vmatpush.xpose.msra.mxu0 0.0
    %709 = vmatpush.xpose.msra.mxu0 0.0
    %710 = vmatpush.xpose.msra.mxu0 0.0
    %711 = vmatpush.xpose.msra.mxu0 0.0
    %712 = vmatpush.xpose.msra.mxu0 0.0
    %713 = vmatpush.xpose.msra.mxu0 %v696
    %714 = vmatmul.f32.gmra.mxu0 %v418
    %v715 = vpop.f32.mrf.mxu0
    %v716 = vadd.f32 0.0, %v715
    %717 = vdwg.mxu0
    %v718 = vperm.slane %v716, 0
    %v719 = vadd.f32 %v694, %v718
    %vm720 = vcmp.gt.f32.partialorder %v719, 0.0
    %v721 = vmul.f32 %v719, 0.2
    %v722 = vsel %vm720, %v719, %v721
    %v723 = vsel %vm518, %v722, -9e+15
    %v724 = vsel %vm228, %v723, -inf
    %725 = vmax.xlane.f32.xlu0 %v724
    %v726 = vpop.xlane.xlu0 %725
    %v727 = vsub.f32 %v723, %v726
    %v728 = vmul.f32 %v727, 1.442695
    %v729 = vpow.pop %v728
    %v730 = vsel %vm236, %v729, 0.0
    %v731 = vsel %vm228, %v730, 0.0
    %732 = vadd.xlane.f32.xlu0 %v731
    %v733 = vpop.xlane.xlu0 %732
    %v734 = vrcp.pop %v733
    %v735 = vmul.f32 %v730, %v734
    %v737 = vsel %vm228, %v735, 0
    %739 = vmatpush.msra.mxu0 0.0
    %740 = vmatpush.msra.mxu0 0.0
    %741 = vmatpush.msra.mxu0 0.0
    %742 = vmatpush.msra.mxu0 0.0
    %743 = vmatpush.msra.mxu0 0.0
    %744 = vmatpush.msra.mxu0 0.0
    %745 = vmatpush.msra.mxu0 0.0
    %746 = vmatpush.msra.mxu0 0.0
    %747 = vmatpush.msra.mxu0 0.0
    %748 = vmatpush.msra.mxu0 0.0
    %749 = vmatpush.msra.mxu0 0.0
    %750 = vmatpush.msra.mxu0 0.0
    %751 = vmatpush.msra.mxu0 0.0
    %752 = vmatpush.msra.mxu0 0.0
    %753 = vmatpush.msra.mxu0 0.0
    %754 = vmatpush.msra.mxu0 %v688
    %755 = vmatmul.f32.gmra.mxu0 %v737
    %v756 = vpop.f32.mrf.mxu0
    %v757 = vadd.f32 0.0, %v756
    %758 = vdwg.mxu0
    %vm759 = vcmp.gt.f32.partialorder %v757, 0.0
    %v760 = vmul.f32 %v757, 1.442695
    %v761 = vpow.pop %v760
    %v762 = vsub.f32 %v761, 1.0
    %v763 = vsel %vm759, %v757, %v762
    %v764 = vpack.c.bf16 %v763, %v488
    %v765 = vld [vmem:[%s5] sm:$0xf]
    %v766 = vld [vmem:[%s5 + $0x4] sm:$0xf]
    %v767 = vld [vmem:[%s5 + $0x8] sm:$0xf]
    %v768 = vld [vmem:[%s5 + $0xc] sm:$0xf]
    %v769 = vld [vmem:[%s1] sm:$0xff]
    %v770 = vld [vmem:[%s1 + $0x8] sm:$0xff]
    %v771 = vld [vmem:[%s8] sm:$0x1]
    %773 = vset.pattern.permute.xlu0 0
    %774 = vperm.xlu0 %773, %v769
    %v775 = vpop.permute.xlu0 %774
    %778 = vset.pattern.permute.xlu0 0
    %779 = vperm.xlu0 %778, %v770
    %v780 = vpop.permute.xlu0 %779
    %v782 = vperm.slane %v771, 0
    %v783 = vmul.f32 %v775, %v782
    %v784 = vmul.f32 %v780, %v782
    %v789 = vunpack.c.l.b16 %v765
    %v790 = vunpack.c.l.b16 %v766
    %v791 = vunpack.c.l.b16 %v767
    %v792 = vunpack.c.l.b16 %v768
    %v793 = vpack.c.b16 %v790, %v789
    %v794 = vpack.c.b16 %v792, %v791
    %v798 = vsel %vm86, %v764, 0
    %800 = vmatpush.bf16.msra.mxu0 0
    %801 = vmatpush.bf16.msra.mxu0 0
    %802 = vmatpush.bf16.msra.mxu0 0
    %803 = vmatpush.bf16.msra.mxu0 0
    %804 = vmatpush.bf16.msra.mxu0 0
    %805 = vmatpush.bf16.msra.mxu0 0
    %806 = vmatpush.bf16.msra.mxu0 %v794
    %807 = vmatpush.bf16.msra.mxu0 %v793
    %808 = vmatmul.bf16.gmra.mxu0 %v798
    %v809 = vpop.f32.mrf.mxu0
    %v810 = vadd.f32 %v783, %v809
    %v811 = vpop.f32.mrf.mxu0
    %v812 = vadd.f32 %v784, %v811
    %813 = vdwg.mxu0
    %v814 = vld [vmem:[%s8 + $0x1] sm:$0x1]
    %v815 = vperm.slane %v814, 0
    %v816 = vadd.f32 %v810, %v815
    %v817 = vadd.f32 %v812, %v815
    %v818 = vmax.f32 %v816, 0.0
    %v819 = vmax.f32 %v817, 0.0
    %v820 = vpack.c.bf16 %v819, %v818
    %v821 = vld [vmem:[%s6] sm:$0xf]
    %v822 = vld [vmem:[%s6 + $0x4] sm:$0xf]
    %v823 = vld [vmem:[%s6 + $0x8] sm:$0xf]
    %v824 = vld [vmem:[%s6 + $0xc] sm:$0xf]
    %v825 = vld [vmem:[%s8 + $0x2] sm:$0x1]
    %v826 = vperm.slane %v825, 0
    %v831 = vunpack.c.l.b16 %v821
    %v832 = vunpack.c.l.b16 %v822
    %v833 = vunpack.c.l.b16 %v823
    %v834 = vunpack.c.l.b16 %v824
    %v835 = vpack.c.b16 %v832, %v831
    %v836 = vpack.c.b16 %v834, %v833
    %v840 = vsel %vm86, %v820, 0
    %842 = vmatpush.bf16.msra.mxu0 0
    %843 = vmatpush.bf16.msra.mxu0 0
    %844 = vmatpush.bf16.msra.mxu0 0
    %845 = vmatpush.bf16.msra.mxu0 0
    %846 = vmatpush.bf16.msra.mxu0 0
    %847 = vmatpush.bf16.msra.mxu0 0
    %848 = vmatpush.bf16.msra.mxu0 %v836
    %849 = vmatpush.bf16.msra.mxu0 %v835
    %850 = vmatmul.bf16.gmra.mxu0 %v840
    %v851 = vpop.f32.mrf.mxu0
    %v852 = vadd.f32 %v826, %v851
    %v853 = vpop.f32.mrf.mxu0
    %v854 = vadd.f32 %v826, %v853
    %855 = vdwg.mxu0
    %v856 = vmax.f32 %v852, 0.0
    %v857 = vmax.f32 %v854, 0.0
    %v858 = vld [vmem:[%s7] sm:$0x1]
    %v859 = vld [vmem:[%s8 + $0x3] sm:$0x1]
    %861 = vset.pattern.permute.xlu0 0
    %862 = vperm.xlu0 %861, %v859
    %v863 = vpop.permute.xlu0 %862
    %v866 = vsel %vm86, %v858, 0
    %v869 = vsel %vm86, %v856, 0
    %v872 = vsel %vm86, %v857, 0
    %874 = vmatpush.xpose.msra.mxu0 0.0
    %875 = vmatpush.xpose.msra.mxu0 0.0
    %876 = vmatpush.xpose.msra.mxu0 0.0
    %877 = vmatpush.xpose.msra.mxu0 0.0
    %878 = vmatpush.xpose.msra.mxu0 0.0
    %879 = vmatpush.xpose.msra.mxu0 0.0
    %880 = vmatpush.xpose.msra.mxu0 0.0
    %881 = vmatpush.xpose.msra.mxu0 0.0
    %882 = vmatpush.xpose.msra.mxu0 0.0
    %883 = vmatpush.xpose.msra.mxu0 0.0
    %884 = vmatpush.xpose.msra.mxu0 0.0
    %885 = vmatpush.xpose.msra.mxu0 0.0
    %886 = vmatpush.xpose.msra.mxu0 0.0
    %887 = vmatpush.xpose.msra.mxu0 0.0
    %888 = vmatpush.xpose.msra.mxu0 %v872
    %889 = vmatpush.xpose.msra.mxu0 %v869
    %890 = vmatmul.f32.gmra.mxu0 %v866
    %v891 = vpop.f32.mrf.mxu0
    %v892 = vadd.f32 %v863, %v891
    %893 = vdwg.mxu0
    %vm894 = vcmp.ge.s32.totalorder %v156, 0
    %vm895 = vmand %vm894, %vm157
    %v896 = vsel %vm895, %v892, -9e+15
    %vm897 = vcmask 122880
    %v898 = vsel %vm897, %v896, -inf
    %899 = vmax.xlane.f32.xlu0 %v898
    %v900 = vpop.xlane.xlu0 %899
    %v901 = vsub.f32 %v896, %v900
    %v902 = vmul.f32 %v901, 1.442695
    %v903 = vpow.pop %v902
    %v904 = vsel %vm895, %v903, 0.0
    %v905 = vsel %vm897, %v904, 0.0
    %906 = vadd.xlane.f32.xlu0 %v905
    %v907 = vpop.xlane.xlu0 %906
    %v908 = vrcp.pop %v907
    %v909 = vmul.f32 %v907, %v908
    %v910 = vsub.f32 1.0, %v909
    %v911 = vmul.f32 %v908, %v910
    %v912 = vadd.f32 %v908, %v911
    %vm913 = vweird.f32 %v907
    %vm914 = vweird.f32 %v908
    %vm915 = vmor %vm913, %vm914
    %v916 = vsel %vm915, %v908, %v912
    %v917 = vand.u32 2147483647, %v907
    %vm918 = vcmp.eq.f32.partialorder %v917, 8.507059e+37
    %v919 = vand.u32 %v907, 2147483648
    %v920 = vor.u32 1.1754944e-38, %v919
    %v921 = vsel %vm918, %v920, %v916
    %v922 = vmul.f32 %v904, %v921
    %v923 = vadd.f32 %v922, 0.0
    %vm924 = vcmp.ge.s32.totalorder %v156, 8
    %vm925 = vcmp.lt.s32.totalorder %v156, 13
    %vm926 = vmand %vm924, %vm925
    %v927 = vsel %vm926, %v892, -9e+15
    %v928 = vsel %vm897, %v927, -inf
    %929 = vmax.xlane.f32.xlu0 %v928
    %v930 = vpop.xlane.xlu0 %929
    %v931 = vsub.f32 %v927, %v930
    %v932 = vmul.f32 %v931, 1.442695
    %v933 = vpow.pop %v932
    %v934 = vsel %vm926, %v933, 0.0
    %v935 = vsel %vm897, %v934, 0.0
    %936 = vadd.xlane.f32.xlu0 %v935
    %v937 = vpop.xlane.xlu0 %936
    %v938 = vrcp.pop %v937
    %v939 = vmul.f32 %v937, %v938
    %v940 = vsub.f32 1.0, %v939
    %v941 = vmul.f32 %v938, %v940
    %v942 = vadd.f32 %v938, %v941
    %vm943 = vweird.f32 %v937
    %vm944 = vweird.f32 %v938
    %vm945 = vmor %vm943, %vm944
    %v946 = vsel %vm945, %v938, %v942
    %v947 = vand.u32 2147483647, %v937
    %vm948 = vcmp.eq.f32.partialorder %v947, 8.507059e+37
    %v949 = vand.u32 %v937, 2147483648
    %v950 = vor.u32 1.1754944e-38, %v949
    %v951 = vsel %vm948, %v950, %v946
    %v952 = vmul.f32 %v934, %v951
    %v953 = vadd.f32 %v923, %v952
    %954 = vst.msk [vmem:[#allocation5] sm:$0x1] %vm897, %v953
    %v955 = vld [vmem:[%s9] sm:$0xff]
    %v956 = vld [vmem:[%s9 + $0x8] sm:$0xff]
    %v957 = vld [vmem:[%s9 + $0x10] sm:$0xff]
    %v958 = vld [vmem:[%s9 + $0x18] sm:$0xff]
    %v959 = vld [vmem:[%s12] ss:$2 sm:$0x3]
    %v961 = vperm.slane %v959, 0
    %v962 = vperm.slane %v959, 1
    %v969 = vunpack.c.l.b16 %v955
    %v970 = vunpack.c.h.b16 %v955
    %v971 = vunpack.c.l.b16 %v956
    %v972 = vunpack.c.h.b16 %v956
    %v973 = vunpack.c.l.b16 %v957
    %v974 = vunpack.c.h.b16 %v957
    %v975 = vunpack.c.l.b16 %v958
    %v976 = vunpack.c.h.b16 %v958
    %v977 = vpack.c.b16 %v971, %v969
    %v978 = vpack.c.b16 %v972, %v970
    %v979 = vpack.c.b16 %v975, %v973
    %v980 = vpack.c.b16 %v976, %v974
    %985 = vmatpush.bf16.msra.mxu0 0
    %986 = vmatpush.bf16.msra.mxu0 0
    %987 = vmatpush.bf16.msra.mxu0 0
    %988 = vmatpush.bf16.msra.mxu0 0
    %989 = vmatpush.bf16.msra.mxu0 0
    %990 = vmatpush.bf16.msra.mxu0 0
    %991 = vmatpush.bf16.msra.mxu0 %v979
    %992 = vmatpush.bf16.msra.mxu0 %v977
    %993 = vmatmul.bf16.gmra.mxu0 %v88
    %v994 = vpop.f32.mrf.mxu0
    %v995 = vadd.f32 %v961, %v994
    %v996 = vpop.f32.mrf.mxu0
    %v997 = vadd.f32 %v961, %v996
    %998 = vdwg.mxu0
    %999 = vmatpush.bf16.msra.mxu0 0
    %1000 = vmatpush.bf16.msra.mxu0 0
    %1001 = vmatpush.bf16.msra.mxu0 0
    %1002 = vmatpush.bf16.msra.mxu0 0
    %1003 = vmatpush.bf16.msra.mxu0 0
    %1004 = vmatpush.bf16.msra.mxu0 0
    %1005 = vmatpush.bf16.msra.mxu0 %v980
    %1006 = vmatpush.bf16.msra.mxu0 %v978
    %1007 = vmatmul.bf16.gmra.mxu0 %v88
    %v1008 = vpop.f32.mrf.mxu0
    %v1009 = vadd.f32 %v962, %v1008
    %v1010 = vpop.f32.mrf.mxu0
    %v1011 = vadd.f32 %v962, %v1010
    %1012 = vdwg.mxu0
    %v1013 = vmax.f32 %v995, 0.0
    %v1014 = vmax.f32 %v1009, 0.0
    %v1015 = vmax.f32 %v997, 0.0
    %v1016 = vmax.f32 %v1011, 0.0
    %v1017 = vpack.c.bf16 %v1015, %v1013
    %v1018 = vpack.c.bf16 %v1016, %v1014
    %v1019 = vld [vmem:[#allocation2] sm:$0xff]
    %v1020 = vld [vmem:[#allocation2 + $0x8] sm:$0xff]
    %v1021 = vld [vmem:[#allocation2 + $0x10] sm:$0xff]
    %v1022 = vld [vmem:[#allocation2 + $0x18] sm:$0xff]
    %v1023 = vld [vmem:[#allocation2 + $0x20] sm:$0xff]
    %v1024 = vld [vmem:[#allocation2 + $0x28] sm:$0xff]
    %v1025 = vld [vmem:[#allocation2 + $0x30] sm:$0xff]
    %v1026 = vld [vmem:[#allocation2 + $0x38] sm:$0xff]
    %v1027 = vld [vmem:[#allocation2 + $0x40] sm:$0xff]
    %v1028 = vld [vmem:[#allocation2 + $0x48] sm:$0xff]
    %v1029 = vld [vmem:[#allocation2 + $0x50] sm:$0xff]
    %v1030 = vld [vmem:[#allocation2 + $0x58] sm:$0xff]
    %v1031 = vld [vmem:[#allocation2 + $0x60] sm:$0xff]
    %v1032 = vld [vmem:[#allocation2 + $0x68] sm:$0xff]
    %v1033 = vld [vmem:[#allocation2 + $0x70] sm:$0xff]
    %v1034 = vld [vmem:[#allocation2 + $0x78] sm:$0xff]
    %v1035 = vld [vmem:[#allocation2 + $0x80] sm:$0xff]
    %v1036 = vld [vmem:[#allocation2 + $0x88] sm:$0xff]
    %v1037 = vld [vmem:[#allocation2 + $0x90] sm:$0xff]
    %v1038 = vld [vmem:[#allocation2 + $0x98] sm:$0xff]
    %v1039 = vld [vmem:[#allocation2 + $0xa0] sm:$0xff]
    %v1040 = vld [vmem:[#allocation2 + $0xa8] sm:$0xff]
    %v1041 = vld [vmem:[#allocation2 + $0xb0] sm:$0xff]
    %v1042 = vld [vmem:[#allocation2 + $0xb8] sm:$0xff]
    %v1043 = vld [vmem:[#allocation2 + $0xc0] sm:$0xff]
    %v1044 = vld [vmem:[#allocation2 + $0xc8] sm:$0xff]
    %v1045 = vld [vmem:[#allocation2 + $0xd0] sm:$0xff]
    %v1046 = vld [vmem:[#allocation2 + $0xd8] sm:$0xff]
    %v1047 = vld [vmem:[#allocation2 + $0xe0] sm:$0xff]
    %v1048 = vld [vmem:[#allocation2 + $0xe8] sm:$0xff]
    %v1049 = vld [vmem:[#allocation2 + $0xf0] sm:$0xff]
    %v1050 = vld [vmem:[#allocation2 + $0xf8] sm:$0xff]
    %s1051 = scalar_lea.vmem %s12, 1
    %v1052 = vld [vmem:[%s1051] ss:$2 sm:$0x3]
    %v1054 = vperm.slane %v1052, 0
    %v1055 = vperm.slane %v1052, 1
    %v1090 = vunpack.c.l.b16 %v1019
    %v1091 = vunpack.c.h.b16 %v1019
    %v1092 = vunpack.c.l.b16 %v1020
    %v1093 = vunpack.c.h.b16 %v1020
    %v1094 = vunpack.c.l.b16 %v1021
    %v1095 = vunpack.c.h.b16 %v1021
    %v1096 = vunpack.c.l.b16 %v1022
    %v1097 = vunpack.c.h.b16 %v1022
    %v1098 = vunpack.c.l.b16 %v1023
    %v1099 = vunpack.c.h.b16 %v1023
    %v1100 = vunpack.c.l.b16 %v1024
    %v1101 = vunpack.c.h.b16 %v1024
    %v1102 = vunpack.c.l.b16 %v1025
    %v1103 = vunpack.c.h.b16 %v1025
    %v1104 = vunpack.c.l.b16 %v1026
    %v1105 = vunpack.c.h.b16 %v1026
    %v1106 = vunpack.c.l.b16 %v1027
    %v1107 = vunpack.c.h.b16 %v1027
    %v1108 = vunpack.c.l.b16 %v1028
    %v1109 = vunpack.c.h.b16 %v1028
    %v1110 = vunpack.c.l.b16 %v1029
    %v1111 = vunpack.c.h.b16 %v1029
    %v1112 = vunpack.c.l.b16 %v1030
    %v1113 = vunpack.c.h.b16 %v1030
    %v1114 = vunpack.c.l.b16 %v1031
    %v1115 = vunpack.c.h.b16 %v1031
    %v1116 = vunpack.c.l.b16 %v1032
    %v1117 = vunpack.c.h.b16 %v1032
    %v1118 = vunpack.c.l.b16 %v1033
    %v1119 = vunpack.c.h.b16 %v1033
    %v1120 = vunpack.c.l.b16 %v1034
    %v1121 = vunpack.c.h.b16 %v1034
    %v1122 = vunpack.c.l.b16 %v1035
    %v1123 = vunpack.c.h.b16 %v1035
    %v1124 = vunpack.c.l.b16 %v1036
    %v1125 = vunpack.c.h.b16 %v1036
    %v1126 = vunpack.c.l.b16 %v1037
    %v1127 = vunpack.c.h.b16 %v1037
    %v1128 = vunpack.c.l.b16 %v1038
    %v1129 = vunpack.c.h.b16 %v1038
    %v1130 = vunpack.c.l.b16 %v1039
    %v1131 = vunpack.c.h.b16 %v1039
    %v1132 = vunpack.c.l.b16 %v1040
    %v1133 = vunpack.c.h.b16 %v1040
    %v1134 = vunpack.c.l.b16 %v1041
    %v1135 = vunpack.c.h.b16 %v1041
    %v1136 = vunpack.c.l.b16 %v1042
    %v1137 = vunpack.c.h.b16 %v1042
    %v1138 = vunpack.c.l.b16 %v1043
    %v1139 = vunpack.c.h.b16 %v1043
    %v1140 = vunpack.c.l.b16 %v1044
    %v1141 = vunpack.c.h.b16 %v1044
    %v1142 = vunpack.c.l.b16 %v1045
    %v1143 = vunpack.c.h.b16 %v1045
    %v1144 = vunpack.c.l.b16 %v1046
    %v1145 = vunpack.c.h.b16 %v1046
    %v1146 = vunpack.c.l.b16 %v1047
    %v1147 = vunpack.c.h.b16 %v1047
    %v1148 = vunpack.c.l.b16 %v1048
    %v1149 = vunpack.c.h.b16 %v1048
    %v1150 = vunpack.c.l.b16 %v1049
    %v1151 = vunpack.c.h.b16 %v1049
    %v1152 = vunpack.c.l.b16 %v1050
    %v1153 = vunpack.c.h.b16 %v1050
    %v1154 = vpack.c.b16 %v1092, %v1090
    %v1155 = vpack.c.b16 %v1093, %v1091
    %v1156 = vpack.c.b16 %v1096, %v1094
    %v1157 = vpack.c.b16 %v1097, %v1095
    %v1158 = vpack.c.b16 %v1100, %v1098
    %v1159 = vpack.c.b16 %v1101, %v1099
    %v1160 = vpack.c.b16 %v1104, %v1102
    %v1161 = vpack.c.b16 %v1105, %v1103
    %v1162 = vpack.c.b16 %v1108, %v1106
    %v1163 = vpack.c.b16 %v1109, %v1107
    %v1164 = vpack.c.b16 %v1112, %v1110
    %v1165 = vpack.c.b16 %v1113, %v1111
    %v1166 = vpack.c.b16 %v1116, %v1114
    %v1167 = vpack.c.b16 %v1117, %v1115
    %v1168 = vpack.c.b16 %v1120, %v1118
    %v1169 = vpack.c.b16 %v1121, %v1119
    %v1170 = vpack.c.b16 %v1124, %v1122
    %v1171 = vpack.c.b16 %v1125, %v1123
    %v1172 = vpack.c.b16 %v1128, %v1126
    %v1173 = vpack.c.b16 %v1129, %v1127
    %v1174 = vpack.c.b16 %v1132, %v1130
    %v1175 = vpack.c.b16 %v1133, %v1131
    %v1176 = vpack.c.b16 %v1136, %v1134
    %v1177 = vpack.c.b16 %v1137, %v1135
    %v1178 = vpack.c.b16 %v1140, %v1138
    %v1179 = vpack.c.b16 %v1141, %v1139
    %v1180 = vpack.c.b16 %v1144, %v1142
    %v1181 = vpack.c.b16 %v1145, %v1143
    %v1182 = vpack.c.b16 %v1148, %v1146
    %v1183 = vpack.c.b16 %v1149, %v1147
    %v1184 = vpack.c.b16 %v1152, %v1150
    %v1185 = vpack.c.b16 %v1153, %v1151
    %1218 = vmatpush.bf16.msra.mxu0 %v1168
    %1219 = vmatpush.bf16.msra.mxu0 %v1166
    %1220 = vmatpush.bf16.msra.mxu0 %v1164
    %1221 = vmatpush.bf16.msra.mxu0 %v1162
    %1222 = vmatpush.bf16.msra.mxu0 %v1160
    %1223 = vmatpush.bf16.msra.mxu0 %v1158
    %1224 = vmatpush.bf16.msra.mxu0 %v1156
    %1225 = vmatpush.bf16.msra.mxu0 %v1154
    %1226 = vmatmul.bf16.gmra.mxu0 %v1017
    %v1227 = vpop.f32.mrf.mxu0
    %v1228 = vadd.f32 %v1054, %v1227
    %v1229 = vpop.f32.mrf.mxu0
    %v1230 = vadd.f32 %v1054, %v1229
    %1231 = vdwg.mxu0
    %1232 = vmatpush.bf16.msra.mxu0 %v1184
    %1233 = vmatpush.bf16.msra.mxu0 %v1182
    %1234 = vmatpush.bf16.msra.mxu0 %v1180
    %1235 = vmatpush.bf16.msra.mxu0 %v1178
    %1236 = vmatpush.bf16.msra.mxu0 %v1176
    %1237 = vmatpush.bf16.msra.mxu0 %v1174
    %1238 = vmatpush.bf16.msra.mxu0 %v1172
    %1239 = vmatpush.bf16.msra.mxu0 %v1170
    %1240 = vmatmul.bf16.gmra.mxu0 %v1018
    %v1241 = vpop.f32.mrf.mxu0
    %v1242 = vadd.f32 %v1228, %v1241
    %v1243 = vpop.f32.mrf.mxu0
    %v1244 = vadd.f32 %v1230, %v1243
    %1245 = vdwg.mxu0
    %1246 = vmatpush.bf16.msra.mxu0 %v1169
    %1247 = vmatpush.bf16.msra.mxu0 %v1167
    %1248 = vmatpush.bf16.msra.mxu0 %v1165
    %1249 = vmatpush.bf16.msra.mxu0 %v1163
    %1250 = vmatpush.bf16.msra.mxu0 %v1161
    %1251 = vmatpush.bf16.msra.mxu0 %v1159
    %1252 = vmatpush.bf16.msra.mxu0 %v1157
    %1253 = vmatpush.bf16.msra.mxu0 %v1155
    %1254 = vmatmul.bf16.gmra.mxu0 %v1017
    %v1255 = vpop.f32.mrf.mxu0
    %v1256 = vadd.f32 %v1055, %v1255
    %v1257 = vpop.f32.mrf.mxu0
    %v1258 = vadd.f32 %v1055, %v1257
    %1259 = vdwg.mxu0
    %1260 = vmatpush.bf16.msra.mxu0 %v1185
    %1261 = vmatpush.bf16.msra.mxu0 %v1183
    %1262 = vmatpush.bf16.msra.mxu0 %v1181
    %1263 = vmatpush.bf16.msra.mxu0 %v1179
    %1264 = vmatpush.bf16.msra.mxu0 %v1177
    %1265 = vmatpush.bf16.msra.mxu0 %v1175
    %1266 = vmatpush.bf16.msra.mxu0 %v1173
    %1267 = vmatpush.bf16.msra.mxu0 %v1171
    %1268 = vmatmul.bf16.gmra.mxu0 %v1018
    %v1269 = vpop.f32.mrf.mxu0
    %v1270 = vadd.f32 %v1256, %v1269
    %v1271 = vpop.f32.mrf.mxu0
    %v1272 = vadd.f32 %v1258, %v1271
    %1273 = vdwg.mxu0
    %v1274 = vmax.f32 %v1242, 0.0
    %v1275 = vmax.f32 %v1270, 0.0
    %v1276 = vmax.f32 %v1244, 0.0
    %v1277 = vmax.f32 %v1272, 0.0
    %v1278 = vpack.c.bf16 %v1276, %v1274
    %v1279 = vpack.c.bf16 %v1277, %v1275
    %v1280 = vld [vmem:[%s11] sm:$0xf]
    %v1281 = vld [vmem:[%s11 + $0x4] sm:$0xf]
    %v1282 = vld [vmem:[%s11 + $0x8] sm:$0xf]
    %v1283 = vld [vmem:[%s11 + $0xc] sm:$0xf]
    %v1284 = vld [vmem:[%s11 + $0x10] sm:$0xf]
    %v1285 = vld [vmem:[%s11 + $0x14] sm:$0xf]
    %v1286 = vld [vmem:[%s11 + $0x18] sm:$0xf]
    %v1287 = vld [vmem:[%s11 + $0x1c] sm:$0xf]
    %v1288 = vld [vmem:[%s11 + $0x20] sm:$0xf]
    %v1289 = vld [vmem:[%s11 + $0x24] sm:$0xf]
    %v1290 = vld [vmem:[%s11 + $0x28] sm:$0xf]
    %v1291 = vld [vmem:[%s11 + $0x2c] sm:$0xf]
    %v1292 = vld [vmem:[%s11 + $0x30] sm:$0xf]
    %v1293 = vld [vmem:[%s11 + $0x34] sm:$0xf]
    %v1294 = vld [vmem:[%s11 + $0x38] sm:$0xf]
    %v1295 = vld [vmem:[%s11 + $0x3c] sm:$0xf]
    %v1296 = vld [vmem:[%s11 + $0x40] sm:$0xf]
    %v1297 = vld [vmem:[%s11 + $0x44] sm:$0xf]
    %v1298 = vld [vmem:[%s11 + $0x48] sm:$0xf]
    %v1299 = vld [vmem:[%s11 + $0x4c] sm:$0xf]
    %v1300 = vld [vmem:[%s11 + $0x50] sm:$0xf]
    %v1301 = vld [vmem:[%s11 + $0x54] sm:$0xf]
    %v1302 = vld [vmem:[%s11 + $0x58] sm:$0xf]
    %v1303 = vld [vmem:[%s11 + $0x5c] sm:$0xf]
    %v1304 = vld [vmem:[%s11 + $0x60] sm:$0xf]
    %v1305 = vld [vmem:[%s11 + $0x64] sm:$0xf]
    %v1306 = vld [vmem:[%s11 + $0x68] sm:$0xf]
    %v1307 = vld [vmem:[%s11 + $0x6c] sm:$0xf]
    %v1308 = vld [vmem:[%s11 + $0x70] sm:$0xf]
    %v1309 = vld [vmem:[%s11 + $0x74] sm:$0xf]
    %v1310 = vld [vmem:[%s11 + $0x78] sm:$0xf]
    %v1311 = vld [vmem:[%s11 + $0x7c] sm:$0xf]
    %v1312 = vld [vmem:[%s13] sm:$0x1]
    %v1314 = vperm.slane %v1312, 0
    %v1348 = vunpack.c.l.b16 %v1280
    %v1349 = vunpack.c.l.b16 %v1281
    %v1350 = vunpack.c.l.b16 %v1282
    %v1351 = vunpack.c.l.b16 %v1283
    %v1352 = vunpack.c.l.b16 %v1284
    %v1353 = vunpack.c.l.b16 %v1285
    %v1354 = vunpack.c.l.b16 %v1286
    %v1355 = vunpack.c.l.b16 %v1287
    %v1356 = vunpack.c.l.b16 %v1288
    %v1357 = vunpack.c.l.b16 %v1289
    %v1358 = vunpack.c.l.b16 %v1290
    %v1359 = vunpack.c.l.b16 %v1291
    %v1360 = vunpack.c.l.b16 %v1292
    %v1361 = vunpack.c.l.b16 %v1293
    %v1362 = vunpack.c.l.b16 %v1294
    %v1363 = vunpack.c.l.b16 %v1295
    %v1364 = vunpack.c.l.b16 %v1296
    %v1365 = vunpack.c.l.b16 %v1297
    %v1366 = vunpack.c.l.b16 %v1298
    %v1367 = vunpack.c.l.b16 %v1299
    %v1368 = vunpack.c.l.b16 %v1300
    %v1369 = vunpack.c.l.b16 %v1301
    %v1370 = vunpack.c.l.b16 %v1302
    %v1371 = vunpack.c.l.b16 %v1303
    %v1372 = vunpack.c.l.b16 %v1304
    %v1373 = vunpack.c.l.b16 %v1305
    %v1374 = vunpack.c.l.b16 %v1306
    %v1375 = vunpack.c.l.b16 %v1307
    %v1376 = vunpack.c.l.b16 %v1308
    %v1377 = vunpack.c.l.b16 %v1309
    %v1378 = vunpack.c.l.b16 %v1310
    %v1379 = vunpack.c.l.b16 %v1311
    %v1380 = vpack.c.b16 %v1349, %v1348
    %v1381 = vpack.c.b16 %v1351, %v1350
    %v1382 = vpack.c.b16 %v1353, %v1352
    %v1383 = vpack.c.b16 %v1355, %v1354
    %v1384 = vpack.c.b16 %v1357, %v1356
    %v1385 = vpack.c.b16 %v1359, %v1358
    %v1386 = vpack.c.b16 %v1361, %v1360
    %v1387 = vpack.c.b16 %v1363, %v1362
    %v1388 = vpack.c.b16 %v1365, %v1364
    %v1389 = vpack.c.b16 %v1367, %v1366
    %v1390 = vpack.c.b16 %v1369, %v1368
    %v1391 = vpack.c.b16 %v1371, %v1370
    %v1392 = vpack.c.b16 %v1373, %v1372
    %v1393 = vpack.c.b16 %v1375, %v1374
    %v1394 = vpack.c.b16 %v1377, %v1376
    %v1395 = vpack.c.b16 %v1379, %v1378
    %1412 = vmatpush.bf16.msra.mxu0 %v1387
    %1413 = vmatpush.bf16.msra.mxu0 %v1386
    %1414 = vmatpush.bf16.msra.mxu0 %v1385
    %1415 = vmatpush.bf16.msra.mxu0 %v1384
    %1416 = vmatpush.bf16.msra.mxu0 %v1383
    %1417 = vmatpush.bf16.msra.mxu0 %v1382
    %1418 = vmatpush.bf16.msra.mxu0 %v1381
    %1419 = vmatpush.bf16.msra.mxu0 %v1380
    %1420 = vmatmul.bf16.gmra.mxu0 %v1278
    %v1421 = vpop.f32.mrf.mxu0
    %v1422 = vadd.f32 %v1314, %v1421
    %v1423 = vpop.f32.mrf.mxu0
    %v1424 = vadd.f32 %v1314, %v1423
    %1425 = vdwg.mxu0
    %1426 = vmatpush.bf16.msra.mxu0 %v1395
    %1427 = vmatpush.bf16.msra.mxu0 %v1394
    %1428 = vmatpush.bf16.msra.mxu0 %v1393
    %1429 = vmatpush.bf16.msra.mxu0 %v1392
    %1430 = vmatpush.bf16.msra.mxu0 %v1391
    %1431 = vmatpush.bf16.msra.mxu0 %v1390
    %1432 = vmatpush.bf16.msra.mxu0 %v1389
    %1433 = vmatpush.bf16.msra.mxu0 %v1388
    %1434 = vmatmul.bf16.gmra.mxu0 %v1279
    %v1435 = vpop.f32.mrf.mxu0
    %v1436 = vadd.f32 %v1422, %v1435
    %v1437 = vpop.f32.mrf.mxu0
    %v1438 = vadd.f32 %v1424, %v1437
    %1439 = vdwg.mxu0
    %v1440 = vsub.f32 0.0, %v1436
    %v1441 = vsub.f32 0.0, %v1438
    %v1442 = vmul.f32 %v1440, 1.442695
    %v1443 = vpow.pop %v1442
    %v1444 = vmul.f32 %v1441, 1.442695
    %v1445 = vpow.pop %v1444
    %v1446 = vadd.f32 %v1443, 1.0
    %v1447 = vadd.f32 %v1445, 1.0
    %v1448 = vrcp.pop %v1446
    %v1449 = vmul.f32 %v1446, %v1448
    %v1450 = vsub.f32 1.0, %v1449
    %v1451 = vmul.f32 %v1448, %v1450
    %v1452 = vadd.f32 %v1448, %v1451
    %vm1453 = vweird.f32 %v1446
    %vm1454 = vweird.f32 %v1448
    %vm1455 = vmor %vm1453, %vm1454
    %v1456 = vsel %vm1455, %v1448, %v1452
    %v1457 = vand.u32 2147483647, %v1446
    %vm1458 = vcmp.eq.f32.partialorder %v1457, 8.507059e+37
    %v1459 = vand.u32 %v1446, 2147483648
    %v1460 = vor.u32 1.1754944e-38, %v1459
    %v1461 = vsel %vm1458, %v1460, %v1456
    %v1462 = vmul.f32 1.0, %v1461
    %v1463 = vrcp.pop %v1447
    %v1464 = vmul.f32 %v1447, %v1463
    %v1465 = vsub.f32 1.0, %v1464
    %v1466 = vmul.f32 %v1463, %v1465
    %v1467 = vadd.f32 %v1463, %v1466
    %vm1468 = vweird.f32 %v1447
    %vm1469 = vweird.f32 %v1463
    %vm1470 = vmor %vm1468, %vm1469
    %v1471 = vsel %vm1470, %v1463, %v1467
    %v1472 = vand.u32 2147483647, %v1447
    %vm1473 = vcmp.eq.f32.partialorder %v1472, 8.507059e+37
    %v1474 = vand.u32 %v1447, 2147483648
    %v1475 = vor.u32 1.1754944e-38, %v1474
    %v1476 = vsel %vm1473, %v1475, %v1471
    %v1477 = vmul.f32 1.0, %v1476
    %1478 = vst.msk [vmem:[%s15] sm:$0xff] %vm228, %v1462
    %1479 = vst.msk [vmem:[%s15 + $0x8] sm:$0xff] %vm228, %v1477
    // Predicated region
    $region62: #{tpu_custom_call.1} parent=1 // pred_check
      _
    $region63: #{tpu_custom_call.1} parent=1 // pred_check_branch
      %1481 = sbr.rel (0) target = $region65
    $region64: #{tpu_custom_call.1} parent=1 // pred_region
      %1483 = vsyncadd [#allocation4], 0
      %s1485 = sshll.u32 [#allocation5], 4
      %s1486 = int_to_ptr.vmem [resolvable:$true] %s1485
      %s1487 = sshll.u32 %s14, 4
      %s1488 = int_to_ptr.hbm [resolvable:$true] %s1487
      %1490 = dma.vmem_to_hbm [thread:$0]  %s1486, 16, %s1488, [#allocation4]
    $region65: #{tpu_custom_call.1} parent=1 // pred_fallthru
      _
    // Predicated region
    $region66: #{tpu_custom_call.1} parent=1 // pred_check
      _
    $region67: #{tpu_custom_call.1} parent=1 // pred_check_branch
      %1492 = sbr.rel (0) target = $region69
    $region68: #{tpu_custom_call.1} parent=1 // pred_region
      _
    $region69: #{tpu_custom_call.1} parent=1 // pred_fallthru
      _
    // Predicated region
    $region70: #{tpu_custom_call.1} parent=1 // pred_check
      _
    $region71: #{tpu_custom_call.1} parent=1 // pred_check_branch
      %1494 = sbr.rel (0) target = $region73
    $region72: #{tpu_custom_call.1} parent=1 // pred_region
      %1496 = dma.done [#allocation4], 16
    $region73: #{tpu_custom_call.1} parent=1 // pred_fallthru
      _
    // Predicated region
    $region74: #{tpu_custom_call.1} parent=1 // pred_check
      _
    $region75: #{tpu_custom_call.1} parent=1 // pred_check_branch
      %1498 = sbr.rel (0) target = $region77
    $region76: #{tpu_custom_call.1} parent=1 // pred_region
      _
    $region77: #{tpu_custom_call.1} parent=1 // pred_fallthru
      _
    %1499 = vsyncpa [#allocation3], 1
    %1500 = vsyncpa [#allocation4], 1

</llo_original>
